<compile_context>
chip_gen: v7x
topology: tpu7x:2x2x1
jax: 0.10.0
libtpu: 0.0.40
codegen_flags: <defaults>
</compile_context>

<pallas_src>
import math
import functools

import jax
import jax.numpy as jnp
from jax import lax
from jax.experimental import pallas as pl
from jax.experimental.pallas import tpu as pltpu


# --------------------------- Fused MHA kernel ------------------------------ #
def _mha_kernel(q_ref, k_ref, v_ref,
                wq_ref, bq_ref, wk_ref, bk_ref, wv_ref, bv_ref,
                wo_ref, bo_ref,
                *rest,
                num_heads, scale, has_mask, compute_dtype):
    # Ref layout: inputs ... [mask] , output , scratch (kp, vp, ctx).
    if has_mask:
        mask_ref, o_ref, kp_ref, vp_ref, ctx_ref = rest
    else:
        o_ref, kp_ref, vp_ref, ctx_ref = rest

    qt = pl.program_id(1)

    # K / V projections: computed once per batch element (first q-tile) and
    # kept resident in VMEM scratch across the whole q-row axis.
    @pl.when(qt == 0)
    def _():
        xk = k_ref[0]                                # (S, D)
        xv = v_ref[0]
        kp = jnp.dot(xk, wk_ref[...], preferred_element_type=jnp.float32) + bk_ref[...]
        vp = jnp.dot(xv, wv_ref[...], preferred_element_type=jnp.float32) + bv_ref[...]
        kp_ref[...] = kp.astype(compute_dtype)
        vp_ref[...] = vp.astype(compute_dtype)

    # Q projection for this row tile; softmax scale folded in here once.
    xq = q_ref[0]                                    # (TQ, D)
    qp = (jnp.dot(xq, wq_ref[...], preferred_element_type=jnp.float32)
          + bq_ref[...]) * scale
    qp = qp.astype(compute_dtype)

    if has_mask:
        bias = mask_ref[0]                           # (TQ, S) additive f32

    d_model = qp.shape[-1]
    d_k = d_model // num_heads

    for h in range(num_heads):                       # static unroll (small H)
        sl = slice(h * d_k, (h + 1) * d_k)
        qh = qp[:, sl]                               # (TQ, d_k)
        kh = kp_ref[:, sl]                           # (S,  d_k)
        vh = vp_ref[:, sl]

        # q @ k^T with the transpose folded into the MXU contraction dims.
        s = lax.dot_general(qh, kh, (((1,), (1,)), ((), ())),
                            preferred_element_type=jnp.float32)
        if has_mask:
            s = s + bias                             # hoisted additive mask

        # Numerically stable softmax; divide moved to the EUP via approx
        # reciprocal (~1e-3 rel. error vs exact divide -- inference-grade).
        m = jnp.max(s, axis=-1, keepdims=True)
        e = jnp.exp(s - m)
        inv = pl.reciprocal(jnp.sum(e, axis=-1, keepdims=True), approx=True)
        p = (e * inv).astype(compute_dtype)

        # P @ V for this head, written into its column slab of the context.
        ctx_ref[:, sl] = jnp.dot(
            p, vh, preferred_element_type=jnp.float32).astype(compute_dtype)

    # Single output projection over the assembled (TQ, D) context slab.
    y = jnp.dot(ctx_ref[...], wo_ref[...],
                preferred_element_type=jnp.float32) + bo_ref[...]
    o_ref[0] = y.astype(o_ref.dtype)                 # lane-dense (TQ, D) store


# ------------------------------ Wrapper ------------------------------------ #
def _choose_q_block(S, q_block=None, max_tq=512):
    if q_block is not None:
        assert S % q_block == 0 and (q_block == S or q_block % 8 == 0)
        return q_block
    if S <= max_tq:
        return S
    for t in range(max_tq, 7, -8):
        if S % t == 0:
            return t
    return S


def multi_head_attention(q, k, v, params, num_heads, mask=None, q_block=None):
    """q, k, v: (B, S, D).  mask: None or broadcastable to (B, S, S)."""
    B, S, D = q.shape
    assert D % num_heads == 0
    scale = 1.0 / math.sqrt(D // num_heads)

    tq = _choose_q_block(S, q_block)
    nq = S // tq
    compute_dtype = jnp.bfloat16 if q.dtype == jnp.bfloat16 else jnp.float32

    q_spec = pl.BlockSpec((1, tq, D), lambda b, t: (b, t, 0))
    kv_spec = pl.BlockSpec((1, S, D), lambda b, t: (b, 0, 0))   # resident over q-tiles
    w_spec = pl.BlockSpec((D, D), lambda b, t: (0, 0))
    b_spec = pl.BlockSpec((1, D), lambda b, t: (0, 0))

    in_specs = [q_spec, kv_spec, kv_spec,
                w_spec, b_spec, w_spec, b_spec, w_spec, b_spec,
                w_spec, b_spec]
    args = [q, k, v,
            params["wq"], params["bq"].reshape(1, D),
            params["wk"], params["bk"].reshape(1, D),
            params["wv"], params["bv"].reshape(1, D),
            params["wo"], params["bo"].reshape(1, D)]

    has_mask = mask is not None
    if has_mask:
        # Precompute the additive f32 mask ONCE (shared across heads):
        # masked_fill(mask==0, -1e9)  ===  scores + (-1e9 where mask==0 else 0).
        m = jnp.broadcast_to(jnp.asarray(mask), (B, S, S))
        add_mask = jnp.where(m == 0, jnp.float32(-1e9), jnp.float32(0.0))
        in_specs.append(pl.BlockSpec((1, tq, S), lambda b, t: (b, t, 0)))
        args.append(add_mask)

    kern = functools.partial(_mha_kernel, num_heads=num_heads, scale=scale,
                             has_mask=has_mask, compute_dtype=compute_dtype)

    return pl.pallas_call(
        kern,
        out_shape=jax.ShapeDtypeStruct((B, S, D), q.dtype),
        grid=(B, nq),
        in_specs=in_specs,
        out_specs=pl.BlockSpec((1, tq, D), lambda b, t: (b, t, 0)),
        scratch_shapes=[
            pltpu.VMEM((S, D), compute_dtype),    # projected K (resident per batch)
            pltpu.VMEM((S, D), compute_dtype),    # projected V (resident per batch)
            pltpu.VMEM((tq, D), compute_dtype),   # assembled per-tile context
        ],
        compiler_params=pltpu.CompilerParams(
            # Batch across TCs (v7x megacore); q-row axis sequential so the
            # resident K/V projection scratch is valid.
            dimension_semantics=("parallel", "arbitrary"),
            vmem_limit_bytes=48 * 1024 * 1024,
        ),
    )(*args)


# ----------------------------- Reference (pure JAX) ------------------------ #
def mha_reference(q, k, v, params, num_heads, mask=None):
    B, S, D = q.shape
    d_k = D // num_heads

    def proj(x, w, b):
        y = x.reshape(B * S, D) @ w + b
        return y.reshape(B, S, num_heads, d_k).transpose(0, 2, 1, 3)

    qh = proj(q, params["wq"], params["bq"])
    kh = proj(k, params["wk"], params["bk"])
    vh = proj(v, params["wv"], params["bv"])
    s = jnp.einsum("bhqd,bhkd->bhqk", qh, kh) / math.sqrt(d_k)
    if mask is not None:
        m = jnp.broadcast_to(jnp.asarray(mask), (B, S, S))[:, None, :, :]
        s = jnp.where(m == 0, -1e9, s)
    p = jax.nn.softmax(s, axis=-1)
    o = jnp.einsum("bhqk,bhkd->bhqd", p, vh)
    o = o.transpose(0, 2, 1, 3).reshape(B * S, D)
    return (o @ params["wo"] + params["bo"]).reshape(B, S, D)


if __name__ == "__main__":
    # D=128 keeps the (S, D) output stores lane-dense (>=128 wide).
    B, S, D, H = 2, 16, 128, 4  # batch, seq, d_model, num_heads (d_k = 32)

    key = jax.random.PRNGKey(0)
    ks = jax.random.split(key, 11)
    init_scale = 1.0 / math.sqrt(D)

    def w_init(k_):
        return jax.random.uniform(k_, (D, D), jnp.float32, -init_scale, init_scale)

    def b_init(k_):
        return jax.random.uniform(k_, (D,), jnp.float32, -init_scale, init_scale)

    params = {
        "wq": w_init(ks[0]), "bq": b_init(ks[1]),
        "wk": w_init(ks[2]), "bk": b_init(ks[3]),
        "wv": w_init(ks[4]), "bv": b_init(ks[5]),
        "wo": w_init(ks[6]), "bo": b_init(ks[7]),
    }

    q = jax.random.normal(ks[8], (B, S, D), jnp.float32)
    k = jax.random.normal(ks[9], (B, S, D), jnp.float32)
    v = jax.random.normal(ks[10], (B, S, D), jnp.float32)

    # 1) f32, mask=None
    out = multi_head_attention(q, k, v, params, H)
    jax.block_until_ready(out)
    ref = mha_reference(q, k, v, params, H)
    assert out.shape == (B, S, D)
    # tolerance accounts for the approx (EUP) reciprocal in the softmax
    assert jnp.allclose(out, ref, rtol=2e-3, atol=2e-3)

    # 2) f32, causal mask (shared across heads)
    causal = jnp.tril(jnp.ones((S, S), jnp.int32))
    out_m = multi_head_attention(q, k, v, params, H, mask=causal)
    jax.block_until_ready(out_m)
    ref_m = mha_reference(q, k, v, params, H, mask=causal)
    assert jnp.allclose(out_m, ref_m, rtol=2e-3, atol=2e-3)

    # 3) bf16 activations + weights: exercises the bf16 single-pass MXU path.
    q16, k16, v16 = (x.astype(jnp.bfloat16) for x in (q, k, v))
    p16 = {n: w.astype(jnp.bfloat16) for n, w in params.items()}
    out16 = multi_head_attention(q16, k16, v16, p16, H, mask=causal)
    jax.block_until_ready(out16)
    assert out16.dtype == jnp.bfloat16
    assert jnp.allclose(out16.astype(jnp.float32), ref_m, rtol=5e-2, atol=5e-2)

    # 4) exercise the q-row tiling + resident-KV-projection path (grid = (B, 2)).
    S2 = 256
    q2 = jax.random.normal(jax.random.PRNGKey(1), (B, S2, D), jnp.float32)
    k2 = jax.random.normal(jax.random.PRNGKey(2), (B, S2, D), jnp.float32)
    v2 = jax.random.normal(jax.random.PRNGKey(3), (B, S2, D), jnp.float32)
    causal2 = jnp.tril(jnp.ones((S2, S2), jnp.int32))
    out2 = multi_head_attention(q2, k2, v2, params, H, mask=causal2, q_block=128)
    jax.block_until_ready(out2)
    ref2 = mha_reference(q2, k2, v2, params, H, mask=causal2)
    assert jnp.allclose(out2, ref2, rtol=2e-3, atol=2e-3)

    print("KERNEL_OK")
</pallas_src>

<mosaic_0001>
module attributes {stable_mosaic.version = 11 : i64} {
  func.func @_mha_kernel(%arg0: i32, %arg1: i32, %arg2: memref<1x16x128xf32, #tpu.memory_space<vmem>>, %arg3: memref<1x16x128xf32, #tpu.memory_space<vmem>>, %arg4: memref<1x16x128xf32, #tpu.memory_space<vmem>>, %arg5: memref<128x128xf32, #tpu.memory_space<vmem>>, %arg6: memref<1x128xf32, #tpu.memory_space<vmem>>, %arg7: memref<128x128xf32, #tpu.memory_space<vmem>>, %arg8: memref<1x128xf32, #tpu.memory_space<vmem>>, %arg9: memref<128x128xf32, #tpu.memory_space<vmem>>, %arg10: memref<1x128xf32, #tpu.memory_space<vmem>>, %arg11: memref<128x128xf32, #tpu.memory_space<vmem>>, %arg12: memref<1x128xf32, #tpu.memory_space<vmem>>, %arg13: memref<1x16x128xf32, #tpu.memory_space<vmem>>, %arg14: memref<16x128xf32, #tpu.memory_space<vmem>>, %arg15: memref<16x128xf32, #tpu.memory_space<vmem>>, %arg16: memref<16x128xf32, #tpu.memory_space<vmem>>) attributes {dimension_semantics = [#tpu.dimension_semantics<parallel>, #tpu.dimension_semantics<arbitrary>], iteration_bounds = array<i64: 2, 1>, scalar_prefetch = 0 : i64, scratch_operands = 3 : i64, tpu.core_type = #tpu.core_type<tc>, window_params = [{transform_indices = @transform_0, window_bounds = array<i64: 1, 16, 128>}, {transform_indices = @transform_1, window_bounds = array<i64: 1, 16, 128>}, {transform_indices = @transform_2, window_bounds = array<i64: 1, 16, 128>}, {pipeline_mode = #tpu.pipeline_mode<synchronous>, transform_indices = @transform_3, window_bounds = array<i64: 128, 128>}, {pipeline_mode = #tpu.pipeline_mode<synchronous>, transform_indices = @transform_4, window_bounds = array<i64: 1, 128>}, {pipeline_mode = #tpu.pipeline_mode<synchronous>, transform_indices = @transform_5, window_bounds = array<i64: 128, 128>}, {pipeline_mode = #tpu.pipeline_mode<synchronous>, transform_indices = @transform_6, window_bounds = array<i64: 1, 128>}, {pipeline_mode = #tpu.pipeline_mode<synchronous>, transform_indices = @transform_7, window_bounds = array<i64: 128, 128>}, {pipeline_mode = #tpu.pipeline_mode<synchronous>, transform_indices = @transform_8, window_bounds = array<i64: 1, 128>}, {pipeline_mode = #tpu.pipeline_mode<synchronous>, transform_indices = @transform_9, window_bounds = array<i64: 128, 128>}, {pipeline_mode = #tpu.pipeline_mode<synchronous>, transform_indices = @transform_10, window_bounds = array<i64: 1, 128>}, {transform_indices = @transform_11, window_bounds = array<i64: 1, 16, 128>}]} {
    %c0_i32 = arith.constant 0 : i32
    %0 = arith.cmpi eq, %arg1, %c0_i32 : i32
    %1 = arith.extui %0 : i1 to i32
    %c0_i32_0 = arith.constant 0 : i32
    %2 = arith.cmpi ne, %1, %c0_i32_0 : i32
    scf.if %2 {
      %c0_55 = arith.constant 0 : index
      %c0_56 = arith.constant 0 : index
      %c0_57 = arith.constant 0 : index
      %85 = vector.load %arg3[%c0_55, %c0_56, %c0_57] : memref<1x16x128xf32, #tpu.memory_space<vmem>>, vector<1x16x128xf32>
      %86 = vector.shape_cast %85 : vector<1x16x128xf32> to vector<16x128xf32>
      %c0_58 = arith.constant 0 : index
      %c0_59 = arith.constant 0 : index
      %c0_60 = arith.constant 0 : index
      %87 = vector.load %arg4[%c0_58, %c0_59, %c0_60] : memref<1x16x128xf32, #tpu.memory_space<vmem>>, vector<1x16x128xf32>
      %88 = vector.shape_cast %87 : vector<1x16x128xf32> to vector<16x128xf32>
      %c0_61 = arith.constant 0 : index
      %c0_62 = arith.constant 0 : index
      %89 = vector.load %arg7[%c0_61, %c0_62] : memref<128x128xf32, #tpu.memory_space<vmem>>, vector<128x128xf32>
      %cst_63 = arith.constant dense<0.000000e+00> : vector<16x128xf32>
      %90 = tpu.matmul %86, %89, %cst_63 {dimension_numbers = #tpu.dot_dimension_numbers<[1], [0], [0], [1], [0, 0, 1, 1], [], []>} : vector<16x128xf32>, vector<128x128xf32>, vector<16x128xf32> -> vector<16x128xf32>
      %c0_64 = arith.constant 0 : index
      %c0_65 = arith.constant 0 : index
      %91 = vector.load %arg8[%c0_64, %c0_65] : memref<1x128xf32, #tpu.memory_space<vmem>>, vector<1x128xf32>
      %92 = vector.broadcast %91 : vector<1x128xf32> to vector<16x128xf32>
      %93 = arith.addf %90, %92 : vector<16x128xf32>
      %c0_66 = arith.constant 0 : index
      %c0_67 = arith.constant 0 : index
      %94 = vector.load %arg9[%c0_66, %c0_67] : memref<128x128xf32, #tpu.memory_space<vmem>>, vector<128x128xf32>
      %cst_68 = arith.constant dense<0.000000e+00> : vector<16x128xf32>
      %95 = tpu.matmul %88, %94, %cst_68 {dimension_numbers = #tpu.dot_dimension_numbers<[1], [0], [0], [1], [0, 0, 1, 1], [], []>} : vector<16x128xf32>, vector<128x128xf32>, vector<16x128xf32> -> vector<16x128xf32>
      %c0_69 = arith.constant 0 : index
      %c0_70 = arith.constant 0 : index
      %96 = vector.load %arg10[%c0_69, %c0_70] : memref<1x128xf32, #tpu.memory_space<vmem>>, vector<1x128xf32>
      %97 = vector.broadcast %96 : vector<1x128xf32> to vector<16x128xf32>
      %98 = arith.addf %95, %97 : vector<16x128xf32>
      %c0_71 = arith.constant 0 : index
      %c0_72 = arith.constant 0 : index
      %99 = vector.load %arg14[%c0_71, %c0_72] : memref<16x128xf32, #tpu.memory_space<vmem>>, vector<16x128xf32>
      tpu.vector_store %arg14[%c0_71, %c0_72], %93 {strides = array<i32>} : memref<16x128xf32, #tpu.memory_space<vmem>>, vector<16x128xf32>,
      %c0_73 = arith.constant 0 : index
      %c0_74 = arith.constant 0 : index
      %100 = vector.load %arg15[%c0_73, %c0_74] : memref<16x128xf32, #tpu.memory_space<vmem>>, vector<16x128xf32>
      tpu.vector_store %arg15[%c0_73, %c0_74], %98 {strides = array<i32>} : memref<16x128xf32, #tpu.memory_space<vmem>>, vector<16x128xf32>,
    } else {
    }
    %c0 = arith.constant 0 : index
    %c0_1 = arith.constant 0 : index
    %c0_2 = arith.constant 0 : index
    %3 = vector.load %arg2[%c0, %c0_1, %c0_2] : memref<1x16x128xf32, #tpu.memory_space<vmem>>, vector<1x16x128xf32>
    %4 = vector.shape_cast %3 : vector<1x16x128xf32> to vector<16x128xf32>
    %c0_3 = arith.constant 0 : index
    %c0_4 = arith.constant 0 : index
    %5 = vector.load %arg5[%c0_3, %c0_4] : memref<128x128xf32, #tpu.memory_space<vmem>>, vector<128x128xf32>
    %cst = arith.constant dense<0.000000e+00> : vector<16x128xf32>
    %6 = tpu.matmul %4, %5, %cst {dimension_numbers = #tpu.dot_dimension_numbers<[1], [0], [0], [1], [0, 0, 1, 1], [], []>} : vector<16x128xf32>, vector<128x128xf32>, vector<16x128xf32> -> vector<16x128xf32>
    %c0_5 = arith.constant 0 : index
    %c0_6 = arith.constant 0 : index
    %7 = vector.load %arg6[%c0_5, %c0_6] : memref<1x128xf32, #tpu.memory_space<vmem>>, vector<1x128xf32>
    %8 = vector.broadcast %7 : vector<1x128xf32> to vector<16x128xf32>
    %9 = arith.addf %6, %8 : vector<16x128xf32>
    %cst_7 = arith.constant 0.176776692 : f32
    %10 = vector.broadcast %cst_7 : f32 to vector<16x128xf32>
    %11 = arith.mulf %9, %10 : vector<16x128xf32>
    %12 = vector.extract_strided_slice %11 {offsets = [0, 0], sizes = [16, 32], strides = [1, 1]} : vector<16x128xf32> to vector<16x32xf32>
    %c0_8 = arith.constant 0 : index
    %c0_9 = arith.constant 0 : index
    %13 = vector.load %arg14[%c0_8, %c0_9] : memref<16x128xf32, #tpu.memory_space<vmem>>, vector<16x32xf32>
    %c0_10 = arith.constant 0 : index
    %c0_11 = arith.constant 0 : index
    %14 = vector.load %arg15[%c0_10, %c0_11] : memref<16x128xf32, #tpu.memory_space<vmem>>, vector<16x32xf32>
    %cst_12 = arith.constant dense<0.000000e+00> : vector<16x16xf32>
    %15 = tpu.matmul %12, %13, %cst_12 {dimension_numbers = #tpu.dot_dimension_numbers<[1], [1], [0], [0], [0, 0, 1, 0], [], []>} : vector<16x32xf32>, vector<16x32xf32>, vector<16x16xf32> -> vector<16x16xf32>
    %cst_13 = arith.constant dense<0xFF800000> : vector<16xf32>
    %16 = vector.multi_reduction <maximumf>, %15, %cst_13 [1] : vector<16x16xf32> to vector<16xf32>
    %17 = vector.shape_cast %16 : vector<16xf32> to vector<16x1xf32>
    %18 = vector.broadcast %17 : vector<16x1xf32> to vector<16x16xf32>
    %19 = arith.subf %15, %18 : vector<16x16xf32>
    %20 = math.exp %19 : vector<16x16xf32>
    %cst_14 = arith.constant dense<0.000000e+00> : vector<16xf32>
    %21 = vector.multi_reduction <add>, %20, %cst_14 [1] : vector<16x16xf32> to vector<16xf32>
    %22 = vector.shape_cast %21 : vector<16xf32> to vector<16x1xf32>
    %23 = tpu.reciprocal %22 {approx = true} : vector<16x1xf32> -> vector<16x1xf32>
    %24 = vector.broadcast %23 : vector<16x1xf32> to vector<16x16xf32>
    %25 = arith.mulf %20, %24 : vector<16x16xf32>
    %cst_15 = arith.constant dense<0.000000e+00> : vector<16x32xf32>
    %26 = tpu.matmul %25, %14, %cst_15 {dimension_numbers = #tpu.dot_dimension_numbers<[1], [0], [0], [1], [0, 0, 1, 1], [], []>} : vector<16x16xf32>, vector<16x32xf32>, vector<16x32xf32> -> vector<16x32xf32>
    %c0_16 = arith.constant 0 : index
    %c0_17 = arith.constant 0 : index
    %27 = vector.load %arg16[%c0_16, %c0_17] : memref<16x128xf32, #tpu.memory_space<vmem>>, vector<16x32xf32>
    tpu.vector_store %arg16[%c0_16, %c0_17], %26 {strides = array<i32>} : memref<16x128xf32, #tpu.memory_space<vmem>>, vector<16x32xf32>,
    %28 = vector.extract_strided_slice %11 {offsets = [0, 32], sizes = [16, 32], strides = [1, 1]} : vector<16x128xf32> to vector<16x32xf32>
    %c0_18 = arith.constant 0 : index
    %c32 = arith.constant 32 : index
    %29 = vector.load %arg14[%c0_18, %c32] : memref<16x128xf32, #tpu.memory_space<vmem>>, vector<16x32xf32>
    %c0_19 = arith.constant 0 : index
    %c32_20 = arith.constant 32 : index
    %30 = vector.load %arg15[%c0_19, %c32_20] : memref<16x128xf32, #tpu.memory_space<vmem>>, vector<16x32xf32>
    %cst_21 = arith.constant dense<0.000000e+00> : vector<16x16xf32>
    %31 = tpu.matmul %28, %29, %cst_21 {dimension_numbers = #tpu.dot_dimension_numbers<[1], [1], [0], [0], [0, 0, 1, 0], [], []>} : vector<16x32xf32>, vector<16x32xf32>, vector<16x16xf32> -> vector<16x16xf32>
    %cst_22 = arith.constant dense<0xFF800000> : vector<16xf32>
    %32 = vector.multi_reduction <maximumf>, %31, %cst_22 [1] : vector<16x16xf32> to vector<16xf32>
    %33 = vector.shape_cast %32 : vector<16xf32> to vector<16x1xf32>
    %34 = vector.broadcast %33 : vector<16x1xf32> to vector<16x16xf32>
    %35 = arith.subf %31, %34 : vector<16x16xf32>
    %36 = math.exp %35 : vector<16x16xf32>
    %cst_23 = arith.constant dense<0.000000e+00> : vector<16xf32>
    %37 = vector.multi_reduction <add>, %36, %cst_23 [1] : vector<16x16xf32> to vector<16xf32>
    %38 = vector.shape_cast %37 : vector<16xf32> to vector<16x1xf32>
    %39 = tpu.reciprocal %38 {approx = true} : vector<16x1xf32> -> vector<16x1xf32>
    %40 = vector.broadcast %39 : vector<16x1xf32> to vector<16x16xf32>
    %41 = arith.mulf %36, %40 : vector<16x16xf32>
    %cst_24 = arith.constant dense<0.000000e+00> : vector<16x32xf32>
    %42 = tpu.matmul %41, %30, %cst_24 {dimension_numbers = #tpu.dot_dimension_numbers<[1], [0], [0], [1], [0, 0, 1, 1], [], []>} : vector<16x16xf32>, vector<16x32xf32>, vector<16x32xf32> -> vector<16x32xf32>
    %c0_25 = arith.constant 0 : index
    %c32_26 = arith.constant 32 : index
    %43 = vector.load %arg16[%c0_25, %c32_26] : memref<16x128xf32, #tpu.memory_space<vmem>>, vector<16x32xf32>
    tpu.vector_store %arg16[%c0_25, %c32_26], %42 {strides = array<i32>} : memref<16x128xf32, #tpu.memory_space<vmem>>, vector<16x32xf32>,
    %44 = vector.extract_strided_slice %11 {offsets = [0, 64], sizes = [16, 32], strides = [1, 1]} : vector<16x128xf32> to vector<16x32xf32>
    %c0_27 = arith.constant 0 : index
    %c64 = arith.constant 64 : index
    %45 = vector.load %arg14[%c0_27, %c64] : memref<16x128xf32, #tpu.memory_space<vmem>>, vector<16x32xf32>
    %c0_28 = arith.constant 0 : index
    %c64_29 = arith.constant 64 : index
    %46 = vector.load %arg15[%c0_28, %c64_29] : memref<16x128xf32, #tpu.memory_space<vmem>>, vector<16x32xf32>
    %cst_30 = arith.constant dense<0.000000e+00> : vector<16x16xf32>
    %47 = tpu.matmul %44, %45, %cst_30 {dimension_numbers = #tpu.dot_dimension_numbers<[1], [1], [0], [0], [0, 0, 1, 0], [], []>} : vector<16x32xf32>, vector<16x32xf32>, vector<16x16xf32> -> vector<16x16xf32>
    %cst_31 = arith.constant dense<0xFF800000> : vector<16xf32>
    %48 = vector.multi_reduction <maximumf>, %47, %cst_31 [1] : vector<16x16xf32> to vector<16xf32>
    %49 = vector.shape_cast %48 : vector<16xf32> to vector<16x1xf32>
    %50 = vector.broadcast %49 : vector<16x1xf32> to vector<16x16xf32>
    %51 = arith.subf %47, %50 : vector<16x16xf32>
    %52 = math.exp %51 : vector<16x16xf32>
    %cst_32 = arith.constant dense<0.000000e+00> : vector<16xf32>
    %53 = vector.multi_reduction <add>, %52, %cst_32 [1] : vector<16x16xf32> to vector<16xf32>
    %54 = vector.shape_cast %53 : vector<16xf32> to vector<16x1xf32>
    %55 = tpu.reciprocal %54 {approx = true} : vector<16x1xf32> -> vector<16x1xf32>
    %56 = vector.broadcast %55 : vector<16x1xf32> to vector<16x16xf32>
    %57 = arith.mulf %52, %56 : vector<16x16xf32>
    %cst_33 = arith.constant dense<0.000000e+00> : vector<16x32xf32>
    %58 = tpu.matmul %57, %46, %cst_33 {dimension_numbers = #tpu.dot_dimension_numbers<[1], [0], [0], [1], [0, 0, 1, 1], [], []>} : vector<16x16xf32>, vector<16x32xf32>, vector<16x32xf32> -> vector<16x32xf32>
    %c0_34 = arith.constant 0 : index
    %c64_35 = arith.constant 64 : index
    %59 = vector.load %arg16[%c0_34, %c64_35] : memref<16x128xf32, #tpu.memory_space<vmem>>, vector<16x32xf32>
    tpu.vector_store %arg16[%c0_34, %c64_35], %58 {strides = array<i32>} : memref<16x128xf32, #tpu.memory_space<vmem>>, vector<16x32xf32>,
    %60 = vector.extract_strided_slice %11 {offsets = [0, 96], sizes = [16, 32], strides = [1, 1]} : vector<16x128xf32> to vector<16x32xf32>
    %c0_36 = arith.constant 0 : index
    %c96 = arith.constant 96 : index
    %61 = vector.load %arg14[%c0_36, %c96] : memref<16x128xf32, #tpu.memory_space<vmem>>, vector<16x32xf32>
    %c0_37 = arith.constant 0 : index
    %c96_38 = arith.constant 96 : index
    %62 = vector.load %arg15[%c0_37, %c96_38] : memref<16x128xf32, #tpu.memory_space<vmem>>, vector<16x32xf32>
    %cst_39 = arith.constant dense<0.000000e+00> : vector<16x16xf32>
    %63 = tpu.matmul %60, %61, %cst_39 {dimension_numbers = #tpu.dot_dimension_numbers<[1], [1], [0], [0], [0, 0, 1, 0], [], []>} : vector<16x32xf32>, vector<16x32xf32>, vector<16x16xf32> -> vector<16x16xf32>
    %cst_40 = arith.constant dense<0xFF800000> : vector<16xf32>
    %64 = vector.multi_reduction <maximumf>, %63, %cst_40 [1] : vector<16x16xf32> to vector<16xf32>
    %65 = vector.shape_cast %64 : vector<16xf32> to vector<16x1xf32>
    %66 = vector.broadcast %65 : vector<16x1xf32> to vector<16x16xf32>
    %67 = arith.subf %63, %66 : vector<16x16xf32>
    %68 = math.exp %67 : vector<16x16xf32>
    %cst_41 = arith.constant dense<0.000000e+00> : vector<16xf32>
    %69 = vector.multi_reduction <add>, %68, %cst_41 [1] : vector<16x16xf32> to vector<16xf32>
    %70 = vector.shape_cast %69 : vector<16xf32> to vector<16x1xf32>
    %71 = tpu.reciprocal %70 {approx = true} : vector<16x1xf32> -> vector<16x1xf32>
    %72 = vector.broadcast %71 : vector<16x1xf32> to vector<16x16xf32>
    %73 = arith.mulf %68, %72 : vector<16x16xf32>
    %cst_42 = arith.constant dense<0.000000e+00> : vector<16x32xf32>
    %74 = tpu.matmul %73, %62, %cst_42 {dimension_numbers = #tpu.dot_dimension_numbers<[1], [0], [0], [1], [0, 0, 1, 1], [], []>} : vector<16x16xf32>, vector<16x32xf32>, vector<16x32xf32> -> vector<16x32xf32>
    %c0_43 = arith.constant 0 : index
    %c96_44 = arith.constant 96 : index
    %75 = vector.load %arg16[%c0_43, %c96_44] : memref<16x128xf32, #tpu.memory_space<vmem>>, vector<16x32xf32>
    tpu.vector_store %arg16[%c0_43, %c96_44], %74 {strides = array<i32>} : memref<16x128xf32, #tpu.memory_space<vmem>>, vector<16x32xf32>,
    %c0_45 = arith.constant 0 : index
    %c0_46 = arith.constant 0 : index
    %76 = vector.load %arg16[%c0_45, %c0_46] : memref<16x128xf32, #tpu.memory_space<vmem>>, vector<16x128xf32>
    %c0_47 = arith.constant 0 : index
    %c0_48 = arith.constant 0 : index
    %77 = vector.load %arg11[%c0_47, %c0_48] : memref<128x128xf32, #tpu.memory_space<vmem>>, vector<128x128xf32>
    %cst_49 = arith.constant dense<0.000000e+00> : vector<16x128xf32>
    %78 = tpu.matmul %76, %77, %cst_49 {dimension_numbers = #tpu.dot_dimension_numbers<[1], [0], [0], [1], [0, 0, 1, 1], [], []>} : vector<16x128xf32>, vector<128x128xf32>, vector<16x128xf32> -> vector<16x128xf32>
    %c0_50 = arith.constant 0 : index
    %c0_51 = arith.constant 0 : index
    %79 = vector.load %arg12[%c0_50, %c0_51] : memref<1x128xf32, #tpu.memory_space<vmem>>, vector<1x128xf32>
    %80 = vector.broadcast %79 : vector<1x128xf32> to vector<16x128xf32>
    %81 = arith.addf %78, %80 : vector<16x128xf32>
    %c0_52 = arith.constant 0 : index
    %c0_53 = arith.constant 0 : index
    %c0_54 = arith.constant 0 : index
    %82 = vector.load %arg13[%c0_52, %c0_53, %c0_54] : memref<1x16x128xf32, #tpu.memory_space<vmem>>, vector<1x16x128xf32>
    %83 = vector.shape_cast %82 : vector<1x16x128xf32> to vector<16x128xf32>
    %84 = vector.shape_cast %81 : vector<16x128xf32> to vector<1x16x128xf32>
    tpu.vector_store %arg13[%c0_52, %c0_53, %c0_54], %84 {strides = array<i32>} : memref<1x16x128xf32, #tpu.memory_space<vmem>>, vector<1x16x128xf32>,
    return
  }
  func.func @transform_0(%arg0: i32, %arg1: i32) -> (i32, i32, i32) {
    %c0_i32 = arith.constant 0 : i32
    %c0_i32_0 = arith.constant 0 : i32
    return %arg0, %arg1, %c0_i32 : i32, i32, i32
  }
  func.func @transform_1(%arg0: i32, %arg1: i32) -> (i32, i32, i32) {
    %c0_i32 = arith.constant 0 : i32
    %c0_i32_0 = arith.constant 0 : i32
    %c0_i32_1 = arith.constant 0 : i32
    return %arg0, %c0_i32, %c0_i32_0 : i32, i32, i32
  }
  func.func @transform_2(%arg0: i32, %arg1: i32) -> (i32, i32, i32) {
    %c0_i32 = arith.constant 0 : i32
    %c0_i32_0 = arith.constant 0 : i32
    %c0_i32_1 = arith.constant 0 : i32
    return %arg0, %c0_i32, %c0_i32_0 : i32, i32, i32
  }
  func.func @transform_3(%arg0: i32, %arg1: i32) -> (i32, i32) {
    %c0_i32 = arith.constant 0 : i32
    %c0_i32_0 = arith.constant 0 : i32
    %c0_i32_1 = arith.constant 0 : i32
    return %c0_i32, %c0_i32_0 : i32, i32
  }
  func.func @transform_4(%arg0: i32, %arg1: i32) -> (i32, i32) {
    %c0_i32 = arith.constant 0 : i32
    %c0_i32_0 = arith.constant 0 : i32
    %c0_i32_1 = arith.constant 0 : i32
    return %c0_i32, %c0_i32_0 : i32, i32
  }
  func.func @transform_5(%arg0: i32, %arg1: i32) -> (i32, i32) {
    %c0_i32 = arith.constant 0 : i32
    %c0_i32_0 = arith.constant 0 : i32
    %c0_i32_1 = arith.constant 0 : i32
    return %c0_i32, %c0_i32_0 : i32, i32
  }
  func.func @transform_6(%arg0: i32, %arg1: i32) -> (i32, i32) {
    %c0_i32 = arith.constant 0 : i32
    %c0_i32_0 = arith.constant 0 : i32
    %c0_i32_1 = arith.constant 0 : i32
    return %c0_i32, %c0_i32_0 : i32, i32
  }
  func.func @transform_7(%arg0: i32, %arg1: i32) -> (i32, i32) {
    %c0_i32 = arith.constant 0 : i32
    %c0_i32_0 = arith.constant 0 : i32
    %c0_i32_1 = arith.constant 0 : i32
    return %c0_i32, %c0_i32_0 : i32, i32
  }
  func.func @transform_8(%arg0: i32, %arg1: i32) -> (i32, i32) {
    %c0_i32 = arith.constant 0 : i32
    %c0_i32_0 = arith.constant 0 : i32
    %c0_i32_1 = arith.constant 0 : i32
    return %c0_i32, %c0_i32_0 : i32, i32
  }
  func.func @transform_9(%arg0: i32, %arg1: i32) -> (i32, i32) {
    %c0_i32 = arith.constant 0 : i32
    %c0_i32_0 = arith.constant 0 : i32
    %c0_i32_1 = arith.constant 0 : i32
    return %c0_i32, %c0_i32_0 : i32, i32
  }
  func.func @transform_10(%arg0: i32, %arg1: i32) -> (i32, i32) {
    %c0_i32 = arith.constant 0 : i32
    %c0_i32_0 = arith.constant 0 : i32
    %c0_i32_1 = arith.constant 0 : i32
    return %c0_i32, %c0_i32_0 : i32, i32
  }
  func.func @transform_11(%arg0: i32, %arg1: i32) -> (i32, i32, i32) {
    %c0_i32 = arith.constant 0 : i32
    %c0_i32_0 = arith.constant 0 : i32
    return %arg0, %arg1, %c0_i32 : i32, i32, i32
  }
}

</mosaic_0001>

<llo_original>
// kernel: tpu_custom_call.1
$region0: #{tpu_custom_call.1}
  #allocation0 [shape = 'u32[]', space=smem, size = 0x4, offset = 0x4, fixed_abs, tag = 'smem constant byte address 0x4 - core index']
  #allocation1 [shape = 'u32[144,128]{1,0:T(1,128)}', space=vmem, size = 0x12000, scoped, tag = 'internal scratch']
  #allocation2 [shape = 'f32[16,128]{1,0:T(8,128)}', space=vmem, size = 0x2000, scoped, tag = 'scratch operand']
  #allocation3 [shape = 'f32[16,128]{1,0:T(8,128)}', space=vmem, size = 0x2000, scoped, tag = 'scratch operand']
  #allocation4 [shape = 'f32[16,128]{1,0:T(8,128)}', space=vmem, size = 0x2000, scoped, tag = 'scratch operand']
  %s0 = inlined_call_operand.hbm [shape: f32[2,16,128], index: 0, kind: input, shape index: {}]
  %s1 = inlined_call_operand.hbm [shape: f32[2,16,128], index: 1, kind: input, shape index: {}]
  %s2 = inlined_call_operand.hbm [shape: f32[2,16,128], index: 2, kind: input, shape index: {}]
  %s3 = inlined_call_operand.hbm [shape: f32[128,128], index: 3, kind: input, shape index: {}]
  %s4 = inlined_call_operand.vmem [shape: f32[1,128], index: 4, kind: input, shape index: {}]
  %s5 = inlined_call_operand.hbm [shape: f32[128,128], index: 5, kind: input, shape index: {}]
  %s6 = inlined_call_operand.vmem [shape: f32[1,128], index: 6, kind: input, shape index: {}]
  %s7 = inlined_call_operand.hbm [shape: f32[128,128], index: 7, kind: input, shape index: {}]
  %s8 = inlined_call_operand.vmem [shape: f32[1,128], index: 8, kind: input, shape index: {}]
  %s9 = inlined_call_operand.hbm [shape: f32[128,128], index: 9, kind: input, shape index: {}]
  %s10 = inlined_call_operand.vmem [shape: f32[1,128], index: 10, kind: input, shape index: {}]
  %s11 = inlined_call_operand.hbm [shape: f32[2,16,128], index: 11, kind: output, shape index: {}]
  %s12 = sld [smem:[#allocation0]]
  $region109: #{tpu_custom_call.1} parent=0
    _
  %s14 = ssub.s32 1, %s12
  %s15 = scalar_select 0, %s14, %s12
  $region1: #{tpu_custom_call.1} parent=0
    #allocation5 [shape = 'u8[16384]{0}', space=vmem, size = 0x4000, scoped, tag = 'input window, operand 0']
    #allocation6 [shape = 's32[2]{0}', space=sflag, size = 0x8, scoped, tag = 'scoped memory for tpu_custom_call.1']
    #allocation7 [shape = 's32[2]{0}', space=sflag, size = 0x8, scoped, tag = 'scoped memory for tpu_custom_call.1']
    #allocation8 [shape = 'u8[16384]{0}', space=vmem, size = 0x4000, scoped, tag = 'input window, operand 1']
    #allocation9 [shape = 's32[2]{0}', space=sflag, size = 0x8, scoped, tag = 'scoped memory for tpu_custom_call.1']
    #allocation10 [shape = 'u8[16384]{0}', space=vmem, size = 0x4000, scoped, tag = 'input window, operand 2']
    #allocation11 [shape = 'u8[65536]{0}', space=vmem, size = 0x10000, scoped, tag = 'input window, operand 3, single buffered']
    #allocation12 [shape = 's32[1]{0}', space=sflag, size = 0x4, scoped, tag = 'scoped memory for tpu_custom_call.1']
    #allocation13 [shape = 'u8[65536]{0}', space=vmem, size = 0x10000, scoped, tag = 'input window, operand 5, single buffered']
    #allocation14 [shape = 'u8[65536]{0}', space=vmem, size = 0x10000, scoped, tag = 'input window, operand 7, single buffered']
    #allocation15 [shape = 's32[1]{0}', space=sflag, size = 0x4, scoped, tag = 'scoped memory for tpu_custom_call.1']
    #allocation16 [shape = 'u8[65536]{0}', space=vmem, size = 0x10000, scoped, tag = 'input window, operand 9, single buffered']
    #allocation17 [shape = 'u8[16384]{0}', space=vmem, size = 0x4000, scoped, tag = 'output window, operand 0']
    %16 = vsyncpa [#allocation6], 0
    %s17 = scalar_lea.sflag [#allocation6], 1
    %18 = vsyncpa %s17, 0
    %19 = vsyncpa [#allocation9], 0
    %s20 = scalar_lea.sflag [#allocation9], 1
    %21 = vsyncpa %s20, 0
    %22 = vsyncpa [#allocation12], 0
    %23 = vsyncpa [#allocation15], 0
    %24 = vsyncpa [#allocation7], 0
    %s25 = scalar_lea.sflag [#allocation7], 1
    %26 = vsyncpa %s25, 0
    loop: start=0, step=1, limit=4
    $region2: #{tpu_custom_call.1} parent=1 // loop_pre_header
      _
    $region3: #{tpu_custom_call.1} parent=1 // loop_header
      %s28 = sphi 0, %s32
      %p29 = scmp.ge.s32.totalorder %s28, 4
      %s35 = sphi 0, %s47
      %s36 = sphi 0, %s43
      %s37 = sphi 0, %s35
      %s38 = sphi 0, %s36
      %s39 = sphi 0, %s37
      %s40 = sphi 0, %s38
      %s52 = sphi 0, %s54
      %s55 = sphi 0, %s52
      %s56 = sphi 0, %s55
      %s72 = sphi 0, %s56
      %s78 = sphi 0, %s80
      %s81 = sphi 0, %s78
      %s82 = sphi 0, %s81
      %s98 = sphi 0, %s82
      %s104 = sphi 0, %s106
      %s107 = sphi 0, %s104
      %s108 = sphi 0, %s107
      %s124 = sphi 0, %s108
      %s128 = sphi 0, %s128
      %s130 = sphi 0, %s128
      %s131 = sphi 0, %s130
      %s145 = sphi 0, %s131
      %s149 = sphi 0, %s149
      %s151 = sphi 0, %s149
      %s152 = sphi 0, %s151
      %s166 = sphi 0, %s152
      %s170 = sphi 0, %s170
      %s172 = sphi 0, %s170
      %s173 = sphi 0, %s172
      %s187 = sphi 0, %s173
      %s191 = sphi 0, %s191
      %s193 = sphi 0, %s191
      %s194 = sphi 0, %s193
      %s208 = sphi 0, %s194
      %s212 = sphi 0, %s212
      %s214 = sphi 0, %s212
      %s215 = sphi 0, %s214
      %s229 = sphi 0, %s215
      %s233 = sphi 0, %s233
      %s235 = sphi 0, %s233
      %s236 = sphi 0, %s235
      %s250 = sphi 0, %s236
      %s254 = sphi 0, %s254
      %s256 = sphi 0, %s254
      %s257 = sphi 0, %s256
      %s271 = sphi 0, %s257
      %s275 = sphi 0, %s275
      %s277 = sphi 0, %s275
      %s278 = sphi 0, %s277
      %s292 = sphi 0, %s278
      %s300 = sphi 0, %s302
      %s303 = sphi 0, %s300
      %s304 = sphi 0, %s303
      %s320 = sphi 0, %s304
    $region4: #{tpu_custom_call.1} parent=1 // loop_header_branch
      %31 = sbr.rel (%p29) target = $region8
    $region5: #{tpu_custom_call.1} parent=1 // loop_body
      %s33 = ssub.s32 %s28, 1
      %s34 = ssub.s32 %s28, 2
      %s41 = sadd.s32 1, %s36
      %p42 = scmp.ge.s32.totalorder %s41, 1
      %s43 = scalar_select %p42, 0, %s41
      %s44 = sadd.s32 1, %s35
      %s45 = scalar_select %p42, %s44, %s35
      %p46 = scmp.ge.s32.totalorder %s45, 2
      %s47 = scalar_select %p46, 0, %s45
      %s48 = ssub.s32 %s35, %s47
      %s49 = ssub.s32 %s36, %s43
      %s50 = sor.u32 %s48, %s49
      %p51 = scmp.eq.s32.totalorder %s50, 0
      %s53 = sadd.s32 %s52, 1
      %s54 = scalar_select %p51, %s52, %s53
      %p57 = pneg %p51
      %p58 = scmp.eq.s32.totalorder %s28, 1
      %p59 = por %p57, %p58
      %p60 = scmp.ne.s32.totalorder %s52, %s55
      %p61 = scmp.eq.s32.totalorder %s28, 0
      %p62 = por %p60, %p61
      %p63 = scmp.ne.s32.totalorder %s52, %s55
      %p64 = scmp.eq.s32.totalorder %s33, 1
      %p65 = por %p63, %p64
      %p66 = scmp.ne.s32.totalorder %s55, %s56
      %p67 = scmp.eq.s32.totalorder %s33, 0
      %p68 = por %p66, %p67
      %p69 = scmp.ne.s32.totalorder %s55, %s56
      %p70 = scmp.eq.s32.totalorder %s34, 1
      %p71 = por %p69, %p70
      %p73 = scmp.ne.s32.totalorder %s56, %s72
      %p74 = scmp.eq.s32.totalorder %s34, 0
      %p75 = por %p73, %p74
      %s76 = ssub.s32 %s35, %s47
      %p77 = scmp.eq.s32.totalorder %s76, 0
      %s79 = sadd.s32 %s78, 1
      %s80 = scalar_select %p77, %s78, %s79
      %p83 = pneg %p77
      %p84 = scmp.eq.s32.totalorder %s28, 1
      %p85 = por %p83, %p84
      %p86 = scmp.ne.s32.totalorder %s78, %s81
      %p87 = scmp.eq.s32.totalorder %s28, 0
      %p88 = por %p86, %p87
      %p89 = scmp.ne.s32.totalorder %s78, %s81
      %p90 = scmp.eq.s32.totalorder %s33, 1
      %p91 = por %p89, %p90
      %p92 = scmp.ne.s32.totalorder %s81, %s82
      %p93 = scmp.eq.s32.totalorder %s33, 0
      %p94 = por %p92, %p93
      %p95 = scmp.ne.s32.totalorder %s81, %s82
      %p96 = scmp.eq.s32.totalorder %s34, 1
      %p97 = por %p95, %p96
      %p99 = scmp.ne.s32.totalorder %s82, %s98
      %p100 = scmp.eq.s32.totalorder %s34, 0
      %p101 = por %p99, %p100
      %s102 = ssub.s32 %s35, %s47
      %p103 = scmp.eq.s32.totalorder %s102, 0
      %s105 = sadd.s32 %s104, 1
      %s106 = scalar_select %p103, %s104, %s105
      %p109 = pneg %p103
      %p110 = scmp.eq.s32.totalorder %s28, 1
      %p111 = por %p109, %p110
      %p112 = scmp.ne.s32.totalorder %s104, %s107
      %p113 = scmp.eq.s32.totalorder %s28, 0
      %p114 = por %p112, %p113
      %p115 = scmp.ne.s32.totalorder %s104, %s107
      %p116 = scmp.eq.s32.totalorder %s33, 1
      %p117 = por %p115, %p116
      %p118 = scmp.ne.s32.totalorder %s107, %s108
      %p119 = scmp.eq.s32.totalorder %s33, 0
      %p120 = por %p118, %p119
      %p121 = scmp.ne.s32.totalorder %s107, %s108
      %p122 = scmp.eq.s32.totalorder %s34, 1
      %p123 = por %p121, %p122
      %p125 = scmp.ne.s32.totalorder %s108, %s124
      %p126 = scmp.eq.s32.totalorder %s34, 0
      %p127 = por %p125, %p126
      %s129 = sadd.s32 %s128, 1
      %p132 = scmp.eq.s32.totalorder %s28, 1
      %p133 = scmp.ne.s32.totalorder %s128, %s130
      %p134 = scmp.eq.s32.totalorder %s28, 0
      %p135 = por %p133, %p134
      %p136 = scmp.ne.s32.totalorder %s128, %s130
      %p137 = scmp.eq.s32.totalorder %s33, 1
      %p138 = por %p136, %p137
      %p139 = scmp.ne.s32.totalorder %s130, %s131
      %p140 = scmp.eq.s32.totalorder %s33, 0
      %p141 = por %p139, %p140
      %p142 = scmp.ne.s32.totalorder %s130, %s131
      %p143 = scmp.eq.s32.totalorder %s34, 1
      %p144 = por %p142, %p143
      %p146 = scmp.ne.s32.totalorder %s131, %s145
      %p147 = scmp.eq.s32.totalorder %s34, 0
      %p148 = por %p146, %p147
      %s150 = sadd.s32 %s149, 1
      %p153 = scmp.eq.s32.totalorder %s28, 1
      %p154 = scmp.ne.s32.totalorder %s149, %s151
      %p155 = scmp.eq.s32.totalorder %s28, 0
      %p156 = por %p154, %p155
      %p157 = scmp.ne.s32.totalorder %s149, %s151
      %p158 = scmp.eq.s32.totalorder %s33, 1
      %p159 = por %p157, %p158
      %p160 = scmp.ne.s32.totalorder %s151, %s152
      %p161 = scmp.eq.s32.totalorder %s33, 0
      %p162 = por %p160, %p161
      %p163 = scmp.ne.s32.totalorder %s151, %s152
      %p164 = scmp.eq.s32.totalorder %s34, 1
      %p165 = por %p163, %p164
      %p167 = scmp.ne.s32.totalorder %s152, %s166
      %p168 = scmp.eq.s32.totalorder %s34, 0
      %p169 = por %p167, %p168
      %s171 = sadd.s32 %s170, 1
      %p174 = scmp.eq.s32.totalorder %s28, 1
      %p175 = scmp.ne.s32.totalorder %s170, %s172
      %p176 = scmp.eq.s32.totalorder %s28, 0
      %p177 = por %p175, %p176
      %p178 = scmp.ne.s32.totalorder %s170, %s172
      %p179 = scmp.eq.s32.totalorder %s33, 1
      %p180 = por %p178, %p179
      %p181 = scmp.ne.s32.totalorder %s172, %s173
      %p182 = scmp.eq.s32.totalorder %s33, 0
      %p183 = por %p181, %p182
      %p184 = scmp.ne.s32.totalorder %s172, %s173
      %p185 = scmp.eq.s32.totalorder %s34, 1
      %p186 = por %p184, %p185
      %p188 = scmp.ne.s32.totalorder %s173, %s187
      %p189 = scmp.eq.s32.totalorder %s34, 0
      %p190 = por %p188, %p189
      %s192 = sadd.s32 %s191, 1
      %p195 = scmp.eq.s32.totalorder %s28, 1
      %p196 = scmp.ne.s32.totalorder %s191, %s193
      %p197 = scmp.eq.s32.totalorder %s28, 0
      %p198 = por %p196, %p197
      %p199 = scmp.ne.s32.totalorder %s191, %s193
      %p200 = scmp.eq.s32.totalorder %s33, 1
      %p201 = por %p199, %p200
      %p202 = scmp.ne.s32.totalorder %s193, %s194
      %p203 = scmp.eq.s32.totalorder %s33, 0
      %p204 = por %p202, %p203
      %p205 = scmp.ne.s32.totalorder %s193, %s194
      %p206 = scmp.eq.s32.totalorder %s34, 1
      %p207 = por %p205, %p206
      %p209 = scmp.ne.s32.totalorder %s194, %s208
      %p210 = scmp.eq.s32.totalorder %s34, 0
      %p211 = por %p209, %p210
      %s213 = sadd.s32 %s212, 1
      %p216 = scmp.eq.s32.totalorder %s28, 1
      %p217 = scmp.ne.s32.totalorder %s212, %s214
      %p218 = scmp.eq.s32.totalorder %s28, 0
      %p219 = por %p217, %p218
      %p220 = scmp.ne.s32.totalorder %s212, %s214
      %p221 = scmp.eq.s32.totalorder %s33, 1
      %p222 = por %p220, %p221
      %p223 = scmp.ne.s32.totalorder %s214, %s215
      %p224 = scmp.eq.s32.totalorder %s33, 0
      %p225 = por %p223, %p224
      %p226 = scmp.ne.s32.totalorder %s214, %s215
      %p227 = scmp.eq.s32.totalorder %s34, 1
      %p228 = por %p226, %p227
      %p230 = scmp.ne.s32.totalorder %s215, %s229
      %p231 = scmp.eq.s32.totalorder %s34, 0
      %p232 = por %p230, %p231
      %s234 = sadd.s32 %s233, 1
      %p237 = scmp.eq.s32.totalorder %s28, 1
      %p238 = scmp.ne.s32.totalorder %s233, %s235
      %p239 = scmp.eq.s32.totalorder %s28, 0
      %p240 = por %p238, %p239
      %p241 = scmp.ne.s32.totalorder %s233, %s235
      %p242 = scmp.eq.s32.totalorder %s33, 1
      %p243 = por %p241, %p242
      %p244 = scmp.ne.s32.totalorder %s235, %s236
      %p245 = scmp.eq.s32.totalorder %s33, 0
      %p246 = por %p244, %p245
      %p247 = scmp.ne.s32.totalorder %s235, %s236
      %p248 = scmp.eq.s32.totalorder %s34, 1
      %p249 = por %p247, %p248
      %p251 = scmp.ne.s32.totalorder %s236, %s250
      %p252 = scmp.eq.s32.totalorder %s34, 0
      %p253 = por %p251, %p252
      %s255 = sadd.s32 %s254, 1
      %p258 = scmp.eq.s32.totalorder %s28, 1
      %p259 = scmp.ne.s32.totalorder %s254, %s256
      %p260 = scmp.eq.s32.totalorder %s28, 0
      %p261 = por %p259, %p260
      %p262 = scmp.ne.s32.totalorder %s254, %s256
      %p263 = scmp.eq.s32.totalorder %s33, 1
      %p264 = por %p262, %p263
      %p265 = scmp.ne.s32.totalorder %s256, %s257
      %p266 = scmp.eq.s32.totalorder %s33, 0
      %p267 = por %p265, %p266
      %p268 = scmp.ne.s32.totalorder %s256, %s257
      %p269 = scmp.eq.s32.totalorder %s34, 1
      %p270 = por %p268, %p269
      %p272 = scmp.ne.s32.totalorder %s257, %s271
      %p273 = scmp.eq.s32.totalorder %s34, 0
      %p274 = por %p272, %p273
      %s276 = sadd.s32 %s275, 1
      %p279 = scmp.eq.s32.totalorder %s28, 1
      %p280 = scmp.ne.s32.totalorder %s275, %s277
      %p281 = scmp.eq.s32.totalorder %s28, 0
      %p282 = por %p280, %p281
      %p283 = scmp.ne.s32.totalorder %s275, %s277
      %p284 = scmp.eq.s32.totalorder %s33, 1
      %p285 = por %p283, %p284
      %p286 = scmp.ne.s32.totalorder %s277, %s278
      %p287 = scmp.eq.s32.totalorder %s33, 0
      %p288 = por %p286, %p287
      %p289 = scmp.ne.s32.totalorder %s277, %s278
      %p290 = scmp.eq.s32.totalorder %s34, 1
      %p291 = por %p289, %p290
      %p293 = scmp.ne.s32.totalorder %s278, %s292
      %p294 = scmp.eq.s32.totalorder %s34, 0
      %p295 = por %p293, %p294
      %s296 = ssub.s32 %s35, %s47
      %s297 = ssub.s32 %s36, %s43
      %s298 = sor.u32 %s296, %s297
      %p299 = scmp.eq.s32.totalorder %s298, 0
      %s301 = sadd.s32 %s300, 1
      %s302 = scalar_select %p299, %s300, %s301
      %p305 = pneg %p299
      %p306 = scmp.eq.s32.totalorder %s28, 1
      %p307 = por %p305, %p306
      %p308 = scmp.ne.s32.totalorder %s300, %s303
      %p309 = scmp.eq.s32.totalorder %s28, 0
      %p310 = por %p308, %p309
      %p311 = scmp.ne.s32.totalorder %s300, %s303
      %p312 = scmp.eq.s32.totalorder %s33, 1
      %p313 = por %p311, %p312
      %p314 = scmp.ne.s32.totalorder %s303, %s304
      %p315 = scmp.eq.s32.totalorder %s33, 0
      %p316 = por %p314, %p315
      %p317 = scmp.ne.s32.totalorder %s303, %s304
      %p318 = scmp.eq.s32.totalorder %s34, 1
      %p319 = por %p317, %p318
      %p321 = scmp.ne.s32.totalorder %s304, %s320
      %p322 = scmp.eq.s32.totalorder %s34, 0
      %p323 = por %p321, %p322
      %p324 = scmp.le.s32.totalorder 1, %s28
      %p325 = scmp.lt.s32.totalorder %s28, 3
      %p326 = pnand %p324, %p325
      %p327 = pneg %p326
      // Predicated region
      $region9: #{tpu_custom_call.1} parent=5 // pred_check
        _
      $region10: #{tpu_custom_call.1} parent=5 // pred_check_branch
        %329 = sbr.rel (%p326) target = $region12
      $region11: #{tpu_custom_call.1} parent=5 // pred_region
        %s330 = ssub.s32 %s28, 1
        // Predicated region
        $region13: #{tpu_custom_call.1} parent=11 // pred_check
          %p331 = pneg %p141
        $region14: #{tpu_custom_call.1} parent=11 // pred_check_branch
          %333 = sbr.rel (%p331) target = $region16
        $region15: #{tpu_custom_call.1} parent=11 // pred_region
          %s335 = ssub.s32 2048, 2048
          %336 = vsyncadd [#allocation12], %s335
          %s337 = sshll.u32 [#allocation11], 4
          %s338 = int_to_ptr.vmem [resolvable:$true] %s337
          %343 = dma.hbm_to_vmem [thread:$0]  %s3, 2048, %s338, [#allocation12], 128, 128, 8
        $region16: #{tpu_custom_call.1} parent=11 // pred_fallthru
          _
        // Predicated region
        $region17: #{tpu_custom_call.1} parent=11 // pred_check
          %p344 = pneg %p162
        $region18: #{tpu_custom_call.1} parent=11 // pred_check_branch
          %346 = sbr.rel (%p344) target = $region20
        $region19: #{tpu_custom_call.1} parent=11 // pred_region
          _
        $region20: #{tpu_custom_call.1} parent=11 // pred_fallthru
          _
        // Predicated region
        $region21: #{tpu_custom_call.1} parent=11 // pred_check
          %p347 = pneg %p183
        $region22: #{tpu_custom_call.1} parent=11 // pred_check_branch
          %349 = sbr.rel (%p347) target = $region24
        $region23: #{tpu_custom_call.1} parent=11 // pred_region
          %s351 = ssub.s32 2048, 2048
          %352 = vsyncadd [#allocation12], %s351
          %s353 = sshll.u32 [#allocation13], 4
          %s354 = int_to_ptr.vmem [resolvable:$true] %s353
          %359 = dma.hbm_to_vmem [thread:$0]  %s5, 2048, %s354, [#allocation12], 128, 128, 8
        $region24: #{tpu_custom_call.1} parent=11 // pred_fallthru
          _
        // Predicated region
        $region25: #{tpu_custom_call.1} parent=11 // pred_check
          %p360 = pneg %p204
        $region26: #{tpu_custom_call.1} parent=11 // pred_check_branch
          %362 = sbr.rel (%p360) target = $region28
        $region27: #{tpu_custom_call.1} parent=11 // pred_region
          _
        $region28: #{tpu_custom_call.1} parent=11 // pred_fallthru
          _
        // Predicated region
        $region29: #{tpu_custom_call.1} parent=11 // pred_check
          %p363 = pneg %p225
        $region30: #{tpu_custom_call.1} parent=11 // pred_check_branch
          %365 = sbr.rel (%p363) target = $region32
        $region31: #{tpu_custom_call.1} parent=11 // pred_region
          %s367 = ssub.s32 2048, 2048
          %368 = vsyncadd [#allocation15], %s367
          %s369 = sshll.u32 [#allocation14], 4
          %s370 = int_to_ptr.vmem [resolvable:$true] %s369
          %375 = dma.hbm_to_vmem [thread:$0]  %s7, 2048, %s370, [#allocation15], 128, 128, 8
        $region32: #{tpu_custom_call.1} parent=11 // pred_fallthru
          _
        // Predicated region
        $region33: #{tpu_custom_call.1} parent=11 // pred_check
          %p376 = pneg %p246
        $region34: #{tpu_custom_call.1} parent=11 // pred_check_branch
          %378 = sbr.rel (%p376) target = $region36
        $region35: #{tpu_custom_call.1} parent=11 // pred_region
          _
        $region36: #{tpu_custom_call.1} parent=11 // pred_fallthru
          _
        // Predicated region
        $region37: #{tpu_custom_call.1} parent=11 // pred_check
          %p379 = pneg %p267
        $region38: #{tpu_custom_call.1} parent=11 // pred_check_branch
          %381 = sbr.rel (%p379) target = $region40
        $region39: #{tpu_custom_call.1} parent=11 // pred_region
          %s383 = ssub.s32 2048, 2048
          %384 = vsyncadd [#allocation15], %s383
          %s385 = sshll.u32 [#allocation16], 4
          %s386 = int_to_ptr.vmem [resolvable:$true] %s385
          %391 = dma.hbm_to_vmem [thread:$0]  %s9, 2048, %s386, [#allocation15], 128, 128, 8
        $region40: #{tpu_custom_call.1} parent=11 // pred_fallthru
          _
        // Predicated region
        $region41: #{tpu_custom_call.1} parent=11 // pred_check
          %p392 = pneg %p288
        $region42: #{tpu_custom_call.1} parent=11 // pred_check_branch
          %394 = sbr.rel (%p392) target = $region44
        $region43: #{tpu_custom_call.1} parent=11 // pred_region
          _
        $region44: #{tpu_custom_call.1} parent=11 // pred_fallthru
          _
      $region12: #{tpu_custom_call.1} parent=5 // pred_fallthru
        _
      %p395 = scmp.lt.s32.totalorder %s28, 2
      // Predicated region
      $region45: #{tpu_custom_call.1} parent=5 // pred_check
        %p396 = pneg %p395
      $region46: #{tpu_custom_call.1} parent=5 // pred_check_branch
        %398 = sbr.rel (%p396) target = $region48
      $region47: #{tpu_custom_call.1} parent=5 // pred_region
        // Predicated region
        $region49: #{tpu_custom_call.1} parent=47 // pred_check
          %p399 = pneg %p62
        $region50: #{tpu_custom_call.1} parent=47 // pred_check_branch
          %401 = sbr.rel (%p399) target = $region52
        $region51: #{tpu_custom_call.1} parent=47 // pred_region
          %s402 = sand.u32 %s52, 1
          %s403 = scalar_lea.sflag [#allocation6], %s402
          %s404 = sand.u32 %s52, 1
          %s405 = smul.addr %s404, 16
          %s406 = scalar_lea.vmem [#allocation5], %s405
          %s407 = smul.u32 2, %s36
          %s409 = ssub.s32 256, 256
          %410 = vsyncadd %s403, %s409
          %s411 = smul.addr %s35, 2
          %s412 = sadd.s32 %s407, %s411
          %s413 = smul.addr %s412, 128
          %s414 = scalar_lea.hbm %s0, %s413
          %s415 = sshll.u32 %s406, 4
          %s416 = int_to_ptr.vmem [resolvable:$true] %s415
          %421 = dma.hbm_to_vmem [thread:$0]  %s414, 256, %s416, %s403, 128, 128, 8
        $region52: #{tpu_custom_call.1} parent=47 // pred_fallthru
          _
        // Predicated region
        $region53: #{tpu_custom_call.1} parent=47 // pred_check
          %p422 = pneg %p88
        $region54: #{tpu_custom_call.1} parent=47 // pred_check_branch
          %424 = sbr.rel (%p422) target = $region56
        $region55: #{tpu_custom_call.1} parent=47 // pred_region
          %s425 = sand.u32 %s28, 1
          %s426 = scalar_lea.sflag [#allocation9], %s425
          %s427 = sand.u32 %s78, 1
          %s428 = smul.addr %s427, 16
          %s429 = scalar_lea.vmem [#allocation8], %s428
          %s431 = ssub.s32 256, 256
          %432 = vsyncadd %s426, %s431
          %s433 = smul.addr %s35, 2
          %s434 = smul.addr %s433, 128
          %s435 = scalar_lea.hbm %s1, %s434
          %s436 = sshll.u32 %s429, 4
          %s437 = int_to_ptr.vmem [resolvable:$true] %s436
          %442 = dma.hbm_to_vmem [thread:$0]  %s435, 256, %s437, %s426, 128, 128, 8
        $region56: #{tpu_custom_call.1} parent=47 // pred_fallthru
          _
        // Predicated region
        $region57: #{tpu_custom_call.1} parent=47 // pred_check
          %p443 = pneg %p114
        $region58: #{tpu_custom_call.1} parent=47 // pred_check_branch
          %445 = sbr.rel (%p443) target = $region60
        $region59: #{tpu_custom_call.1} parent=47 // pred_region
          %s446 = sand.u32 %s28, 1
          %s447 = scalar_lea.sflag [#allocation9], %s446
          %s448 = sand.u32 %s104, 1
          %s449 = smul.addr %s448, 16
          %s450 = scalar_lea.vmem [#allocation10], %s449
          %s452 = ssub.s32 256, 256
          %453 = vsyncadd %s447, %s452
          %s454 = smul.addr %s35, 2
          %s455 = smul.addr %s454, 128
          %s456 = scalar_lea.hbm %s2, %s455
          %s457 = sshll.u32 %s450, 4
          %s458 = int_to_ptr.vmem [resolvable:$true] %s457
          %463 = dma.hbm_to_vmem [thread:$0]  %s456, 256, %s458, %s447, 128, 128, 8
        $region60: #{tpu_custom_call.1} parent=47 // pred_fallthru
          _
      $region48: #{tpu_custom_call.1} parent=5 // pred_fallthru
        _
      %p464 = scmp.le.s32.totalorder 1, %s28
      %p465 = scmp.lt.s32.totalorder %s28, 3
      %p466 = pnand %p464, %p465
      %p467 = pneg %p466
      // Predicated region
      $region61: #{tpu_custom_call.1} parent=5 // pred_check
        _
      $region62: #{tpu_custom_call.1} parent=5 // pred_check_branch
        %469 = sbr.rel (%p466) target = $region64
      $region63: #{tpu_custom_call.1} parent=5 // pred_region
        %s470 = ssub.s32 %s28, 1
        %s471 = sand.u32 %s55, 1
        %s472 = scalar_lea.sflag [#allocation6], %s471
        %s473 = sand.u32 %s55, 1
        %s474 = smul.addr %s473, 16
        %s475 = scalar_lea.vmem [#allocation5], %s474
        // Predicated region
        $region65: #{tpu_custom_call.1} parent=63 // pred_check
          %p476 = pneg %p68
        $region66: #{tpu_custom_call.1} parent=63 // pred_check_branch
          %478 = sbr.rel (%p476) target = $region68
        $region67: #{tpu_custom_call.1} parent=63 // pred_region
          %479 = dma.done %s472, 256
        $region68: #{tpu_custom_call.1} parent=63 // pred_fallthru
          _
        %s480 = sand.u32 %s33, 1
        %s481 = scalar_lea.sflag [#allocation9], %s480
        %s482 = sand.u32 %s81, 1
        %s483 = smul.addr %s482, 16
        %s484 = scalar_lea.vmem [#allocation8], %s483
        // Predicated region
        $region69: #{tpu_custom_call.1} parent=63 // pred_check
          %p485 = pneg %p94
        $region70: #{tpu_custom_call.1} parent=63 // pred_check_branch
          %487 = sbr.rel (%p485) target = $region72
        $region71: #{tpu_custom_call.1} parent=63 // pred_region
          %488 = dma.done %s481, 256
        $region72: #{tpu_custom_call.1} parent=63 // pred_fallthru
          _
        %s489 = sand.u32 %s33, 1
        %s490 = scalar_lea.sflag [#allocation9], %s489
        %s491 = sand.u32 %s107, 1
        %s492 = smul.addr %s491, 16
        %s493 = scalar_lea.vmem [#allocation10], %s492
        // Predicated region
        $region73: #{tpu_custom_call.1} parent=63 // pred_check
          %p494 = pneg %p120
        $region74: #{tpu_custom_call.1} parent=63 // pred_check_branch
          %496 = sbr.rel (%p494) target = $region76
        $region75: #{tpu_custom_call.1} parent=63 // pred_region
          %497 = dma.done %s490, 256
        $region76: #{tpu_custom_call.1} parent=63 // pred_fallthru
          _
        // Predicated region
        $region77: #{tpu_custom_call.1} parent=63 // pred_check
          %p498 = pneg %p141
        $region78: #{tpu_custom_call.1} parent=63 // pred_check_branch
          %500 = sbr.rel (%p498) target = $region80
        $region79: #{tpu_custom_call.1} parent=63 // pred_region
          %501 = dma.done [#allocation12], 2048
        $region80: #{tpu_custom_call.1} parent=63 // pred_fallthru
          _
        // Predicated region
        $region81: #{tpu_custom_call.1} parent=63 // pred_check
          %p502 = pneg %p183
        $region82: #{tpu_custom_call.1} parent=63 // pred_check_branch
          %504 = sbr.rel (%p502) target = $region84
        $region83: #{tpu_custom_call.1} parent=63 // pred_region
          %505 = dma.done [#allocation12], 2048
        $region84: #{tpu_custom_call.1} parent=63 // pred_fallthru
          _
        // Predicated region
        $region85: #{tpu_custom_call.1} parent=63 // pred_check
          %p506 = pneg %p225
        $region86: #{tpu_custom_call.1} parent=63 // pred_check_branch
          %508 = sbr.rel (%p506) target = $region88
        $region87: #{tpu_custom_call.1} parent=63 // pred_region
          %509 = dma.done [#allocation15], 2048
        $region88: #{tpu_custom_call.1} parent=63 // pred_fallthru
          _
        // Predicated region
        $region89: #{tpu_custom_call.1} parent=63 // pred_check
          %p510 = pneg %p267
        $region90: #{tpu_custom_call.1} parent=63 // pred_check_branch
          %512 = sbr.rel (%p510) target = $region92
        $region91: #{tpu_custom_call.1} parent=63 // pred_region
          %513 = dma.done [#allocation15], 2048
        $region92: #{tpu_custom_call.1} parent=63 // pred_fallthru
          _
        %s514 = sand.u32 %s55, 1
        %s515 = scalar_lea.sflag [#allocation6], %s514
        %s516 = sand.u32 %s55, 1
        %s517 = smul.addr %s516, 16
        %s518 = scalar_lea.vmem [#allocation5], %s517
        %p519 = pneg %p68
        %p520 = pneg %p65
        %s521 = sand.u32 %s33, 1
        %s522 = scalar_lea.sflag [#allocation9], %s521
        %s523 = sand.u32 %s81, 1
        %s524 = smul.addr %s523, 16
        %s525 = scalar_lea.vmem [#allocation8], %s524
        %p526 = pneg %p94
        %p527 = pneg %p91
        %s528 = sand.u32 %s33, 1
        %s529 = scalar_lea.sflag [#allocation9], %s528
        %s530 = sand.u32 %s107, 1
        %s531 = smul.addr %s530, 16
        %s532 = scalar_lea.vmem [#allocation10], %s531
        %p533 = pneg %p120
        %p534 = pneg %p117
        %p535 = pneg %p141
        %p536 = pneg %p138
        %p537 = pneg %p162
        %p538 = pneg %p159
        %p539 = pneg %p183
        %p540 = pneg %p180
        %p541 = pneg %p204
        %p542 = pneg %p201
        %p543 = pneg %p225
        %p544 = pneg %p222
        %p545 = pneg %p246
        %p546 = pneg %p243
        %p547 = pneg %p267
        %p548 = pneg %p264
        %p549 = pneg %p288
        %p550 = pneg %p285
        %p551 = pneg %p316
        %p552 = pneg %p313
        %s553 = sand.u32 %s303, 1
        %s554 = scalar_lea.sflag [#allocation7], %s553
        %s555 = sand.u32 %s303, 1
        %s556 = smul.addr %s555, 16
        %s557 = scalar_lea.vmem [#allocation17], %s556
        %s558 = smul.u32 2, %s38
        %s559 = smul.u32 2, %s38
        %p560 = scmp.eq.s32.totalorder %s38, 0
        // Predicated region
        $region93: #{tpu_custom_call.1} parent=63 // pred_check
          %p561 = pneg %p560
        $region94: #{tpu_custom_call.1} parent=63 // pred_check_branch
          %563 = sbr.rel (%p561) target = $region96
        $region95: #{tpu_custom_call.1} parent=63 // pred_region
          %v564 = vld [vmem:[%s484] sm:$0xff]
          %v565 = vld [vmem:[%s484 + $0x8] sm:$0xff]
          %v566 = vld [vmem:[%s493] sm:$0xff]
          %v567 = vld [vmem:[%s493 + $0x8] sm:$0xff]
          %v568 = vld [vmem:[#allocation13] sm:$0xff]
          %v569 = vld [vmem:[#allocation13 + $0x8] sm:$0xff]
          %v570 = vld [vmem:[#allocation13 + $0x10] sm:$0xff]
          %v571 = vld [vmem:[#allocation13 + $0x18] sm:$0xff]
          %v572 = vld [vmem:[#allocation13 + $0x20] sm:$0xff]
          %v573 = vld [vmem:[#allocation13 + $0x28] sm:$0xff]
          %v574 = vld [vmem:[#allocation13 + $0x30] sm:$0xff]
          %v575 = vld [vmem:[#allocation13 + $0x38] sm:$0xff]
          %v576 = vld [vmem:[#allocation13 + $0x40] sm:$0xff]
          %v577 = vld [vmem:[#allocation13 + $0x48] sm:$0xff]
          %v578 = vld [vmem:[#allocation13 + $0x50] sm:$0xff]
          %v579 = vld [vmem:[#allocation13 + $0x58] sm:$0xff]
          %v580 = vld [vmem:[#allocation13 + $0x60] sm:$0xff]
          %v581 = vld [vmem:[#allocation13 + $0x68] sm:$0xff]
          %v582 = vld [vmem:[#allocation13 + $0x70] sm:$0xff]
          %v583 = vld [vmem:[#allocation13 + $0x78] sm:$0xff]
          %v584 = vld [vmem:[%s6] sm:$0x1]
          %v586 = vlaneseq
          %v587 = vshrl.u32 %v586, 7
          %v588 = vsub.s32 0, %v587
          %v589 = vrot.slane %v584, %v588
          %591 = vmatprep.subr.mxu0 0.0
          %592 = vmatpush1.msra.mxu0 %v568
          %593 = vmatprep.subr.mxu0 0.0
          %594 = vmatpush1.msra.mxu0 %v569
          %595 = vmatprep.subr.mxu0 0.0
          %596 = vmatpush1.msra.mxu0 %v570
          %597 = vmatprep.subr.mxu0 0.0
          %598 = vmatpush1.msra.mxu0 %v571
          %599 = vmatprep.subr.mxu0 0.0
          %600 = vmatpush1.msra.mxu0 %v572
          %601 = vmatprep.subr.mxu0 0.0
          %602 = vmatpush1.msra.mxu0 %v573
          %603 = vmatprep.subr.mxu0 0.0
          %604 = vmatpush1.msra.mxu0 %v574
          %605 = vmatprep.subr.mxu0 0.0
          %606 = vmatpush1.msra.mxu0 %v575
          %607 = vmatprep.subr.mxu0 0.0
          %608 = vmatpush1.msra.mxu0 %v576
          %609 = vmatprep.subr.mxu0 0.0
          %610 = vmatpush1.msra.mxu0 %v577
          %611 = vmatprep.subr.mxu0 0.0
          %612 = vmatpush1.msra.mxu0 %v578
          %613 = vmatprep.subr.mxu0 0.0
          %614 = vmatpush1.msra.mxu0 %v579
          %615 = vmatprep.subr.mxu0 0.0
          %616 = vmatpush1.msra.mxu0 %v580
          %617 = vmatprep.subr.mxu0 0.0
          %618 = vmatpush1.msra.mxu0 %v581
          %619 = vmatprep.subr.mxu0 0.0
          %620 = vmatpush1.msra.mxu0 %v582
          %621 = vmatprep.subr.mxu0 0.0
          %622 = vmatpush1.msra.mxu0 %v583
          %623 = vmatprep.subr.mxu0 0.0
          %624 = vmatpush1.msra.mxu0 0.0
          %625 = vmatprep.subr.mxu0 0.0
          %626 = vmatpush1.msra.mxu0 0.0
          %627 = vmatprep.subr.mxu0 0.0
          %628 = vmatpush1.msra.mxu0 0.0
          %629 = vmatprep.subr.mxu0 0.0
          %630 = vmatpush1.msra.mxu0 0.0
          %631 = vmatprep.subr.mxu0 0.0
          %632 = vmatpush1.msra.mxu0 0.0
          %633 = vmatprep.subr.mxu0 0.0
          %634 = vmatpush1.msra.mxu0 0.0
          %635 = vmatprep.subr.mxu0 0.0
          %636 = vmatpush1.msra.mxu0 0.0
          %637 = vmatprep.subr.mxu0 0.0
          %638 = vmatpush1.msra.mxu0 0.0
          %639 = vmatprep.subr.mxu0 0.0
          %640 = vmatpush1.msra.mxu0 0.0
          %641 = vmatprep.subr.mxu0 0.0
          %642 = vmatpush1.msra.mxu0 0.0
          %643 = vmatprep.subr.mxu0 0.0
          %644 = vmatpush1.msra.mxu0 0.0
          %645 = vmatprep.subr.mxu0 0.0
          %646 = vmatpush1.msra.mxu0 0.0
          %647 = vmatprep.subr.mxu0 0.0
          %648 = vmatpush1.msra.mxu0 0.0
          %649 = vmatprep.subr.mxu0 0.0
          %650 = vmatpush1.msra.mxu0 0.0
          %651 = vmatprep.subr.mxu0 0.0
          %652 = vmatpush1.msra.mxu0 0.0
          %653 = vmatprep.subr.mxu0 0.0
          %654 = vmatpush1.msra.mxu0 0.0
          %655 = vmatprep.mubr.f32.mxu0 0.0
          %656 = vmatmul.mubr.f32.gmra.mrb[0].mxu0 %v564
          %v657 = vpop.f32.mrb[0].mxu0
          %v658 = vadd.f32 %v589, %v657
          %v659 = vpop.f32.mrb[0].mxu0
          %660 = vmatprep.mubr.f32.mxu0 0.0
          %661 = vmatmul.mubr.f32.gmra.mrb[0].mxu0 %v565
          %v662 = vpop.f32.mrb[0].mxu0
          %v663 = vadd.f32 %v589, %v662
          %v664 = vpop.f32.mrb[0].mxu0
          %665 = vdwg.mxu0
          %v666 = vld [vmem:[#allocation14] sm:$0xff]
          %v667 = vld [vmem:[#allocation14 + $0x8] sm:$0xff]
          %v668 = vld [vmem:[#allocation14 + $0x10] sm:$0xff]
          %v669 = vld [vmem:[#allocation14 + $0x18] sm:$0xff]
          %v670 = vld [vmem:[#allocation14 + $0x20] sm:$0xff]
          %v671 = vld [vmem:[#allocation14 + $0x28] sm:$0xff]
          %v672 = vld [vmem:[#allocation14 + $0x30] sm:$0xff]
          %v673 = vld [vmem:[#allocation14 + $0x38] sm:$0xff]
          %v674 = vld [vmem:[#allocation14 + $0x40] sm:$0xff]
          %v675 = vld [vmem:[#allocation14 + $0x48] sm:$0xff]
          %v676 = vld [vmem:[#allocation14 + $0x50] sm:$0xff]
          %v677 = vld [vmem:[#allocation14 + $0x58] sm:$0xff]
          %v678 = vld [vmem:[#allocation14 + $0x60] sm:$0xff]
          %v679 = vld [vmem:[#allocation14 + $0x68] sm:$0xff]
          %v680 = vld [vmem:[#allocation14 + $0x70] sm:$0xff]
          %v681 = vld [vmem:[#allocation14 + $0x78] sm:$0xff]
          %v682 = vld [vmem:[%s8] sm:$0x1]
          %v684 = vlaneseq
          %v685 = vshrl.u32 %v684, 7
          %v686 = vsub.s32 0, %v685
          %v687 = vrot.slane %v682, %v686
          %689 = vmatprep.subr.mxu0 0.0
          %690 = vmatpush1.msra.mxu0 %v666
          %691 = vmatprep.subr.mxu0 0.0
          %692 = vmatpush1.msra.mxu0 %v667
          %693 = vmatprep.subr.mxu0 0.0
          %694 = vmatpush1.msra.mxu0 %v668
          %695 = vmatprep.subr.mxu0 0.0
          %696 = vmatpush1.msra.mxu0 %v669
          %697 = vmatprep.subr.mxu0 0.0
          %698 = vmatpush1.msra.mxu0 %v670
          %699 = vmatprep.subr.mxu0 0.0
          %700 = vmatpush1.msra.mxu0 %v671
          %701 = vmatprep.subr.mxu0 0.0
          %702 = vmatpush1.msra.mxu0 %v672
          %703 = vmatprep.subr.mxu0 0.0
          %704 = vmatpush1.msra.mxu0 %v673
          %705 = vmatprep.subr.mxu0 0.0
          %706 = vmatpush1.msra.mxu0 %v674
          %707 = vmatprep.subr.mxu0 0.0
          %708 = vmatpush1.msra.mxu0 %v675
          %709 = vmatprep.subr.mxu0 0.0
          %710 = vmatpush1.msra.mxu0 %v676
          %711 = vmatprep.subr.mxu0 0.0
          %712 = vmatpush1.msra.mxu0 %v677
          %713 = vmatprep.subr.mxu0 0.0
          %714 = vmatpush1.msra.mxu0 %v678
          %715 = vmatprep.subr.mxu0 0.0
          %716 = vmatpush1.msra.mxu0 %v679
          %717 = vmatprep.subr.mxu0 0.0
          %718 = vmatpush1.msra.mxu0 %v680
          %719 = vmatprep.subr.mxu0 0.0
          %720 = vmatpush1.msra.mxu0 %v681
          %721 = vmatprep.subr.mxu0 0.0
          %722 = vmatpush1.msra.mxu0 0.0
          %723 = vmatprep.subr.mxu0 0.0
          %724 = vmatpush1.msra.mxu0 0.0
          %725 = vmatprep.subr.mxu0 0.0
          %726 = vmatpush1.msra.mxu0 0.0
          %727 = vmatprep.subr.mxu0 0.0
          %728 = vmatpush1.msra.mxu0 0.0
          %729 = vmatprep.subr.mxu0 0.0
          %730 = vmatpush1.msra.mxu0 0.0
          %731 = vmatprep.subr.mxu0 0.0
          %732 = vmatpush1.msra.mxu0 0.0
          %733 = vmatprep.subr.mxu0 0.0
          %734 = vmatpush1.msra.mxu0 0.0
          %735 = vmatprep.subr.mxu0 0.0
          %736 = vmatpush1.msra.mxu0 0.0
          %737 = vmatprep.subr.mxu0 0.0
          %738 = vmatpush1.msra.mxu0 0.0
          %739 = vmatprep.subr.mxu0 0.0
          %740 = vmatpush1.msra.mxu0 0.0
          %741 = vmatprep.subr.mxu0 0.0
          %742 = vmatpush1.msra.mxu0 0.0
          %743 = vmatprep.subr.mxu0 0.0
          %744 = vmatpush1.msra.mxu0 0.0
          %745 = vmatprep.subr.mxu0 0.0
          %746 = vmatpush1.msra.mxu0 0.0
          %747 = vmatprep.subr.mxu0 0.0
          %748 = vmatpush1.msra.mxu0 0.0
          %749 = vmatprep.subr.mxu0 0.0
          %750 = vmatpush1.msra.mxu0 0.0
          %751 = vmatprep.subr.mxu0 0.0
          %752 = vmatpush1.msra.mxu0 0.0
          %753 = vmatprep.mubr.f32.mxu0 0.0
          %754 = vmatmul.mubr.f32.gmra.mrb[0].mxu0 %v566
          %v755 = vpop.f32.mrb[0].mxu0
          %v756 = vadd.f32 %v687, %v755
          %v757 = vpop.f32.mrb[0].mxu0
          %758 = vmatprep.mubr.f32.mxu0 0.0
          %759 = vmatmul.mubr.f32.gmra.mrb[0].mxu0 %v567
          %v760 = vpop.f32.mrb[0].mxu0
          %v761 = vadd.f32 %v687, %v760
          %v762 = vpop.f32.mrb[0].mxu0
          %763 = vdwg.mxu0
          %764 = vst [vmem:[#allocation2] sm:$0xff] %v658
          %765 = vst [vmem:[#allocation2 + $0x8] sm:$0xff] %v663
          %766 = vst [vmem:[#allocation3] sm:$0xff] %v756
          %767 = vst [vmem:[#allocation3 + $0x8] sm:$0xff] %v761
        $region96: #{tpu_custom_call.1} parent=63 // pred_fallthru
          _
        %v768 = vld [vmem:[%s475] sm:$0xff]
        %v769 = vld [vmem:[%s475 + $0x8] sm:$0xff]
        %v770 = vld [vmem:[#allocation11] sm:$0xff]
        %v771 = vld [vmem:[#allocation11 + $0x8] sm:$0xff]
        %v772 = vld [vmem:[#allocation11 + $0x10] sm:$0xff]
        %v773 = vld [vmem:[#allocation11 + $0x18] sm:$0xff]
        %v774 = vld [vmem:[#allocation11 + $0x20] sm:$0xff]
        %v775 = vld [vmem:[#allocation11 + $0x28] sm:$0xff]
        %v776 = vld [vmem:[#allocation11 + $0x30] sm:$0xff]
        %v777 = vld [vmem:[#allocation11 + $0x38] sm:$0xff]
        %v778 = vld [vmem:[#allocation11 + $0x40] sm:$0xff]
        %v779 = vld [vmem:[#allocation11 + $0x48] sm:$0xff]
        %v780 = vld [vmem:[#allocation11 + $0x50] sm:$0xff]
        %v781 = vld [vmem:[#allocation11 + $0x58] sm:$0xff]
        %v782 = vld [vmem:[#allocation11 + $0x60] sm:$0xff]
        %v783 = vld [vmem:[#allocation11 + $0x68] sm:$0xff]
        %v784 = vld [vmem:[#allocation11 + $0x70] sm:$0xff]
        %v785 = vld [vmem:[#allocation11 + $0x78] sm:$0xff]
        %v786 = vld [vmem:[%s4] sm:$0x1]
        %v788 = vlaneseq
        %v789 = vshrl.u32 %v788, 7
        %v790 = vsub.s32 0, %v789
        %v791 = vrot.slane %v786, %v790
        %793 = vmatprep.subr.mxu0 0.0
        %794 = vmatpush1.msra.mxu0 %v770
        %795 = vmatprep.subr.mxu0 0.0
        %796 = vmatpush1.msra.mxu0 %v771
        %797 = vmatprep.subr.mxu0 0.0
        %798 = vmatpush1.msra.mxu0 %v772
        %799 = vmatprep.subr.mxu0 0.0
        %800 = vmatpush1.msra.mxu0 %v773
        %801 = vmatprep.subr.mxu0 0.0
        %802 = vmatpush1.msra.mxu0 %v774
        %803 = vmatprep.subr.mxu0 0.0
        %804 = vmatpush1.msra.mxu0 %v775
        %805 = vmatprep.subr.mxu0 0.0
        %806 = vmatpush1.msra.mxu0 %v776
        %807 = vmatprep.subr.mxu0 0.0
        %808 = vmatpush1.msra.mxu0 %v777
        %809 = vmatprep.subr.mxu0 0.0
        %810 = vmatpush1.msra.mxu0 %v778
        %811 = vmatprep.subr.mxu0 0.0
        %812 = vmatpush1.msra.mxu0 %v779
        %813 = vmatprep.subr.mxu0 0.0
        %814 = vmatpush1.msra.mxu0 %v780
        %815 = vmatprep.subr.mxu0 0.0
        %816 = vmatpush1.msra.mxu0 %v781
        %817 = vmatprep.subr.mxu0 0.0
        %818 = vmatpush1.msra.mxu0 %v782
        %819 = vmatprep.subr.mxu0 0.0
        %820 = vmatpush1.msra.mxu0 %v783
        %821 = vmatprep.subr.mxu0 0.0
        %822 = vmatpush1.msra.mxu0 %v784
        %823 = vmatprep.subr.mxu0 0.0
        %824 = vmatpush1.msra.mxu0 %v785
        %825 = vmatprep.subr.mxu0 0.0
        %826 = vmatpush1.msra.mxu0 0.0
        %827 = vmatprep.subr.mxu0 0.0
        %828 = vmatpush1.msra.mxu0 0.0
        %829 = vmatprep.subr.mxu0 0.0
        %830 = vmatpush1.msra.mxu0 0.0
        %831 = vmatprep.subr.mxu0 0.0
        %832 = vmatpush1.msra.mxu0 0.0
        %833 = vmatprep.subr.mxu0 0.0
        %834 = vmatpush1.msra.mxu0 0.0
        %835 = vmatprep.subr.mxu0 0.0
        %836 = vmatpush1.msra.mxu0 0.0
        %837 = vmatprep.subr.mxu0 0.0
        %838 = vmatpush1.msra.mxu0 0.0
        %839 = vmatprep.subr.mxu0 0.0
        %840 = vmatpush1.msra.mxu0 0.0
        %841 = vmatprep.subr.mxu0 0.0
        %842 = vmatpush1.msra.mxu0 0.0
        %843 = vmatprep.subr.mxu0 0.0
        %844 = vmatpush1.msra.mxu0 0.0
        %845 = vmatprep.subr.mxu0 0.0
        %846 = vmatpush1.msra.mxu0 0.0
        %847 = vmatprep.subr.mxu0 0.0
        %848 = vmatpush1.msra.mxu0 0.0
        %849 = vmatprep.subr.mxu0 0.0
        %850 = vmatpush1.msra.mxu0 0.0
        %851 = vmatprep.subr.mxu0 0.0
        %852 = vmatpush1.msra.mxu0 0.0
        %853 = vmatprep.subr.mxu0 0.0
        %854 = vmatpush1.msra.mxu0 0.0
        %855 = vmatprep.subr.mxu0 0.0
        %856 = vmatpush1.msra.mxu0 0.0
        %857 = vmatprep.mubr.f32.mxu0 0.0
        %858 = vmatmul.mubr.f32.gmra.mrb[0].mxu0 %v768
        %v859 = vpop.f32.mrb[0].mxu0
        %v860 = vadd.f32 %v791, %v859
        %v861 = vpop.f32.mrb[0].mxu0
        %862 = vmatprep.mubr.f32.mxu0 0.0
        %863 = vmatmul.mubr.f32.gmra.mrb[0].mxu0 %v769
        %v864 = vpop.f32.mrb[0].mxu0
        %v865 = vadd.f32 %v791, %v864
        %v866 = vpop.f32.mrb[0].mxu0
        %867 = vdwg.mxu0
        %v868 = vmul.f32 %v860, 0.17677669
        %v869 = vmul.f32 %v865, 0.17677669
        %v870 = vld [vmem:[#allocation2] sm:$0xff]
        %v871 = vld [vmem:[#allocation2 + $0x8] sm:$0xff]
        %v872 = vld [vmem:[#allocation3] sm:$0xff]
        %v873 = vld [vmem:[#allocation3 + $0x8] sm:$0xff]
        %vm874 = vcmask 261120
        %v876 = vsel %vm874, %v868, 0
        %v879 = vsel %vm874, %v869, 0
        %v882 = vsel %vm874, %v870, 0
        %v885 = vsel %vm874, %v871, 0
        %887 = vmatprep.subr.mxu0 0.0
        %888 = vmatpush1.xpose.msra.mxu0 %v882
        %889 = vmatprep.subr.mxu0 0.0
        %890 = vmatpush1.xpose.msra.mxu0 %v885
        %891 = vmatprep.subr.mxu0 0.0
        %892 = vmatpush1.xpose.msra.mxu0 0.0
        %893 = vmatprep.subr.mxu0 0.0
        %894 = vmatpush1.xpose.msra.mxu0 0.0
        %895 = vmatprep.subr.mxu0 0.0
        %896 = vmatpush1.xpose.msra.mxu0 0.0
        %897 = vmatprep.subr.mxu0 0.0
        %898 = vmatpush1.xpose.msra.mxu0 0.0
        %899 = vmatprep.subr.mxu0 0.0
        %900 = vmatpush1.xpose.msra.mxu0 0.0
        %901 = vmatprep.subr.mxu0 0.0
        %902 = vmatpush1.xpose.msra.mxu0 0.0
        %903 = vmatprep.subr.mxu0 0.0
        %904 = vmatpush1.xpose.msra.mxu0 0.0
        %905 = vmatprep.subr.mxu0 0.0
        %906 = vmatpush1.xpose.msra.mxu0 0.0
        %907 = vmatprep.subr.mxu0 0.0
        %908 = vmatpush1.xpose.msra.mxu0 0.0
        %909 = vmatprep.subr.mxu0 0.0
        %910 = vmatpush1.xpose.msra.mxu0 0.0
        %911 = vmatprep.subr.mxu0 0.0
        %912 = vmatpush1.xpose.msra.mxu0 0.0
        %913 = vmatprep.subr.mxu0 0.0
        %914 = vmatpush1.xpose.msra.mxu0 0.0
        %915 = vmatprep.subr.mxu0 0.0
        %916 = vmatpush1.xpose.msra.mxu0 0.0
        %917 = vmatprep.subr.mxu0 0.0
        %918 = vmatpush1.xpose.msra.mxu0 0.0
        %919 = vmatprep.subr.mxu0 0.0
        %920 = vmatpush1.xpose.msra.mxu0 0.0
        %921 = vmatprep.subr.mxu0 0.0
        %922 = vmatpush1.xpose.msra.mxu0 0.0
        %923 = vmatprep.subr.mxu0 0.0
        %924 = vmatpush1.xpose.msra.mxu0 0.0
        %925 = vmatprep.subr.mxu0 0.0
        %926 = vmatpush1.xpose.msra.mxu0 0.0
        %927 = vmatprep.subr.mxu0 0.0
        %928 = vmatpush1.xpose.msra.mxu0 0.0
        %929 = vmatprep.subr.mxu0 0.0
        %930 = vmatpush1.xpose.msra.mxu0 0.0
        %931 = vmatprep.subr.mxu0 0.0
        %932 = vmatpush1.xpose.msra.mxu0 0.0
        %933 = vmatprep.subr.mxu0 0.0
        %934 = vmatpush1.xpose.msra.mxu0 0.0
        %935 = vmatprep.subr.mxu0 0.0
        %936 = vmatpush1.xpose.msra.mxu0 0.0
        %937 = vmatprep.subr.mxu0 0.0
        %938 = vmatpush1.xpose.msra.mxu0 0.0
        %939 = vmatprep.subr.mxu0 0.0
        %940 = vmatpush1.xpose.msra.mxu0 0.0
        %941 = vmatprep.subr.mxu0 0.0
        %942 = vmatpush1.xpose.msra.mxu0 0.0
        %943 = vmatprep.subr.mxu0 0.0
        %944 = vmatpush1.xpose.msra.mxu0 0.0
        %945 = vmatprep.subr.mxu0 0.0
        %946 = vmatpush1.xpose.msra.mxu0 0.0
        %947 = vmatprep.subr.mxu0 0.0
        %948 = vmatpush1.xpose.msra.mxu0 0.0
        %949 = vmatprep.subr.mxu0 0.0
        %950 = vmatpush1.xpose.msra.mxu0 0.0
        %951 = vmatprep.mubr.f32.mxu0 0.0
        %952 = vmatmul.mubr.f32.gmra.mrb[0].mxu0 %v876
        %v953 = vpop.f32.mrb[0].mxu0
        %v954 = vadd.f32 0.0, %v953
        %v955 = vpop.f32.mrb[0].mxu0
        %956 = vmatprep.mubr.f32.mxu0 0.0
        %957 = vmatmul.mubr.f32.gmra.mrb[0].mxu0 %v879
        %v958 = vpop.f32.mrb[0].mxu0
        %v959 = vadd.f32 0.0, %v958
        %v960 = vpop.f32.mrb[0].mxu0
        %961 = vdwg.mxu0
        %vm962 = vcmask 130048
        %v963 = vsel %vm962, %v954, -inf
        %964 = vmax.xlane.f32.xlu0 %v963
        %v965 = vpop.xlane.xlu0 %964
        %v966 = vsel %vm962, %v959, -inf
        %967 = vmax.xlane.f32.xlu0 %v966
        %v968 = vpop.xlane.xlu0 %967
        %v969 = vsub.f32 %v954, %v965
        %v970 = vsub.f32 %v959, %v968
        %v971 = vmul.f32 %v969, 1.442695
        %v972 = vpow.pop %v971
        %v973 = vmul.f32 %v970, 1.442695
        %v974 = vpow.pop %v973
        %v975 = vsel %vm962, %v972, 0.0
        %976 = vadd.xlane.f32.xlu0 %v975
        %v977 = vpop.xlane.xlu0 %976
        %v978 = vsel %vm962, %v974, 0.0
        %979 = vadd.xlane.f32.xlu0 %v978
        %v980 = vpop.xlane.xlu0 %979
        %v981 = vrcp.pop %v977
        %v982 = vrcp.pop %v980
        %v983 = vmul.f32 %v972, %v981
        %v984 = vmul.f32 %v974, %v982
        %v986 = vsel %vm962, %v983, 0
        %v989 = vsel %vm962, %v984, 0
        %991 = vmatprep.subr.mxu0 0.0
        %992 = vmatpush1.msra.mxu0 %v872
        %993 = vmatprep.subr.mxu0 0.0
        %994 = vmatpush1.msra.mxu0 %v873
        %995 = vmatprep.subr.mxu0 0.0
        %996 = vmatpush1.msra.mxu0 0.0
        %997 = vmatprep.subr.mxu0 0.0
        %998 = vmatpush1.msra.mxu0 0.0
        %999 = vmatprep.subr.mxu0 0.0
        %1000 = vmatpush1.msra.mxu0 0.0
        %1001 = vmatprep.subr.mxu0 0.0
        %1002 = vmatpush1.msra.mxu0 0.0
        %1003 = vmatprep.subr.mxu0 0.0
        %1004 = vmatpush1.msra.mxu0 0.0
        %1005 = vmatprep.subr.mxu0 0.0
        %1006 = vmatpush1.msra.mxu0 0.0
        %1007 = vmatprep.subr.mxu0 0.0
        %1008 = vmatpush1.msra.mxu0 0.0
        %1009 = vmatprep.subr.mxu0 0.0
        %1010 = vmatpush1.msra.mxu0 0.0
        %1011 = vmatprep.subr.mxu0 0.0
        %1012 = vmatpush1.msra.mxu0 0.0
        %1013 = vmatprep.subr.mxu0 0.0
        %1014 = vmatpush1.msra.mxu0 0.0
        %1015 = vmatprep.subr.mxu0 0.0
        %1016 = vmatpush1.msra.mxu0 0.0
        %1017 = vmatprep.subr.mxu0 0.0
        %1018 = vmatpush1.msra.mxu0 0.0
        %1019 = vmatprep.subr.mxu0 0.0
        %1020 = vmatpush1.msra.mxu0 0.0
        %1021 = vmatprep.subr.mxu0 0.0
        %1022 = vmatpush1.msra.mxu0 0.0
        %1023 = vmatprep.subr.mxu0 0.0
        %1024 = vmatpush1.msra.mxu0 0.0
        %1025 = vmatprep.subr.mxu0 0.0
        %1026 = vmatpush1.msra.mxu0 0.0
        %1027 = vmatprep.subr.mxu0 0.0
        %1028 = vmatpush1.msra.mxu0 0.0
        %1029 = vmatprep.subr.mxu0 0.0
        %1030 = vmatpush1.msra.mxu0 0.0
        %1031 = vmatprep.subr.mxu0 0.0
        %1032 = vmatpush1.msra.mxu0 0.0
        %1033 = vmatprep.subr.mxu0 0.0
        %1034 = vmatpush1.msra.mxu0 0.0
        %1035 = vmatprep.subr.mxu0 0.0
        %1036 = vmatpush1.msra.mxu0 0.0
        %1037 = vmatprep.subr.mxu0 0.0
        %1038 = vmatpush1.msra.mxu0 0.0
        %1039 = vmatprep.subr.mxu0 0.0
        %1040 = vmatpush1.msra.mxu0 0.0
        %1041 = vmatprep.subr.mxu0 0.0
        %1042 = vmatpush1.msra.mxu0 0.0
        %1043 = vmatprep.subr.mxu0 0.0
        %1044 = vmatpush1.msra.mxu0 0.0
        %1045 = vmatprep.subr.mxu0 0.0
        %1046 = vmatpush1.msra.mxu0 0.0
        %1047 = vmatprep.subr.mxu0 0.0
        %1048 = vmatpush1.msra.mxu0 0.0
        %1049 = vmatprep.subr.mxu0 0.0
        %1050 = vmatpush1.msra.mxu0 0.0
        %1051 = vmatprep.subr.mxu0 0.0
        %1052 = vmatpush1.msra.mxu0 0.0
        %1053 = vmatprep.subr.mxu0 0.0
        %1054 = vmatpush1.msra.mxu0 0.0
        %1055 = vmatprep.mubr.f32.mxu0 0.0
        %1056 = vmatmul.mubr.f32.gmra.mrb[0].mxu0 %v986
        %v1057 = vpop.f32.mrb[0].mxu0
        %v1058 = vadd.f32 0.0, %v1057
        %v1059 = vpop.f32.mrb[0].mxu0
        %1060 = vmatprep.mubr.f32.mxu0 0.0
        %1061 = vmatmul.mubr.f32.gmra.mrb[0].mxu0 %v989
        %v1062 = vpop.f32.mrb[0].mxu0
        %v1063 = vadd.f32 0.0, %v1062
        %v1064 = vpop.f32.mrb[0].mxu0
        %1065 = vdwg.mxu0
        %1066 = vst.msk [vmem:[#allocation4] sm:$0xff] %vm874, %v1058
        %1067 = vst.msk [vmem:[#allocation4 + $0x8] sm:$0xff] %vm874, %v1063
        %v1068 = vld [vmem:[#allocation2] sm:$0xff]
        %v1069 = vld [vmem:[#allocation2 + $0x8] sm:$0xff]
        %v1070 = vld [vmem:[#allocation3] sm:$0xff]
        %v1071 = vld [vmem:[#allocation3 + $0x8] sm:$0xff]
        %1072 = vrot.lane.b32.xlu0 %v868, 96
        %v1073 = vpop.permute.xlu0 %1072
        %1074 = vrot.lane.b32.xlu0 %v869, 96
        %v1075 = vpop.permute.xlu0 %1074
        %1078 = vrot.lane.b32.xlu0 %v1068, 96
        %v1079 = vpop.permute.xlu0 %1078
        %1080 = vrot.lane.b32.xlu0 %v1069, 96
        %v1081 = vpop.permute.xlu0 %1080
        %v1082 = vsel %vm874, %v1073, 0
        %v1084 = vsel %vm874, %v1075, 0
        %v1086 = vsel %vm874, %v1079, 0
        %v1088 = vsel %vm874, %v1081, 0
        %1090 = vmatprep.subr.mxu0 0.0
        %1091 = vmatpush1.xpose.msra.mxu0 %v1086
        %1092 = vmatprep.subr.mxu0 0.0
        %1093 = vmatpush1.xpose.msra.mxu0 %v1088
        %1094 = vmatprep.subr.mxu0 0.0
        %1095 = vmatpush1.xpose.msra.mxu0 0.0
        %1096 = vmatprep.subr.mxu0 0.0
        %1097 = vmatpush1.xpose.msra.mxu0 0.0
        %1098 = vmatprep.subr.mxu0 0.0
        %1099 = vmatpush1.xpose.msra.mxu0 0.0
        %1100 = vmatprep.subr.mxu0 0.0
        %1101 = vmatpush1.xpose.msra.mxu0 0.0
        %1102 = vmatprep.subr.mxu0 0.0
        %1103 = vmatpush1.xpose.msra.mxu0 0.0
        %1104 = vmatprep.subr.mxu0 0.0
        %1105 = vmatpush1.xpose.msra.mxu0 0.0
        %1106 = vmatprep.subr.mxu0 0.0
        %1107 = vmatpush1.xpose.msra.mxu0 0.0
        %1108 = vmatprep.subr.mxu0 0.0
        %1109 = vmatpush1.xpose.msra.mxu0 0.0
        %1110 = vmatprep.subr.mxu0 0.0
        %1111 = vmatpush1.xpose.msra.mxu0 0.0
        %1112 = vmatprep.subr.mxu0 0.0
        %1113 = vmatpush1.xpose.msra.mxu0 0.0
        %1114 = vmatprep.subr.mxu0 0.0
        %1115 = vmatpush1.xpose.msra.mxu0 0.0
        %1116 = vmatprep.subr.mxu0 0.0
        %1117 = vmatpush1.xpose.msra.mxu0 0.0
        %1118 = vmatprep.subr.mxu0 0.0
        %1119 = vmatpush1.xpose.msra.mxu0 0.0
        %1120 = vmatprep.subr.mxu0 0.0
        %1121 = vmatpush1.xpose.msra.mxu0 0.0
        %1122 = vmatprep.subr.mxu0 0.0
        %1123 = vmatpush1.xpose.msra.mxu0 0.0
        %1124 = vmatprep.subr.mxu0 0.0
        %1125 = vmatpush1.xpose.msra.mxu0 0.0
        %1126 = vmatprep.subr.mxu0 0.0
        %1127 = vmatpush1.xpose.msra.mxu0 0.0
        %1128 = vmatprep.subr.mxu0 0.0
        %1129 = vmatpush1.xpose.msra.mxu0 0.0
        %1130 = vmatprep.subr.mxu0 0.0
        %1131 = vmatpush1.xpose.msra.mxu0 0.0
        %1132 = vmatprep.subr.mxu0 0.0
        %1133 = vmatpush1.xpose.msra.mxu0 0.0
        %1134 = vmatprep.subr.mxu0 0.0
        %1135 = vmatpush1.xpose.msra.mxu0 0.0
        %1136 = vmatprep.subr.mxu0 0.0
        %1137 = vmatpush1.xpose.msra.mxu0 0.0
        %1138 = vmatprep.subr.mxu0 0.0
        %1139 = vmatpush1.xpose.msra.mxu0 0.0
        %1140 = vmatprep.subr.mxu0 0.0
        %1141 = vmatpush1.xpose.msra.mxu0 0.0
        %1142 = vmatprep.subr.mxu0 0.0
        %1143 = vmatpush1.xpose.msra.mxu0 0.0
        %1144 = vmatprep.subr.mxu0 0.0
        %1145 = vmatpush1.xpose.msra.mxu0 0.0
        %1146 = vmatprep.subr.mxu0 0.0
        %1147 = vmatpush1.xpose.msra.mxu0 0.0
        %1148 = vmatprep.subr.mxu0 0.0
        %1149 = vmatpush1.xpose.msra.mxu0 0.0
        %1150 = vmatprep.subr.mxu0 0.0
        %1151 = vmatpush1.xpose.msra.mxu0 0.0
        %1152 = vmatprep.subr.mxu0 0.0
        %1153 = vmatpush1.xpose.msra.mxu0 0.0
        %1154 = vmatprep.mubr.f32.mxu0 0.0
        %1155 = vmatmul.mubr.f32.gmra.mrb[0].mxu0 %v1082
        %v1156 = vpop.f32.mrb[0].mxu0
        %v1157 = vadd.f32 0.0, %v1156
        %v1158 = vpop.f32.mrb[0].mxu0
        %1159 = vmatprep.mubr.f32.mxu0 0.0
        %1160 = vmatmul.mubr.f32.gmra.mrb[0].mxu0 %v1084
        %v1161 = vpop.f32.mrb[0].mxu0
        %v1162 = vadd.f32 0.0, %v1161
        %v1163 = vpop.f32.mrb[0].mxu0
        %1164 = vdwg.mxu0
        %v1165 = vsel %vm962, %v1157, -inf
        %1166 = vmax.xlane.f32.xlu0 %v1165
        %v1167 = vpop.xlane.xlu0 %1166
        %v1168 = vsel %vm962, %v1162, -inf
        %1169 = vmax.xlane.f32.xlu0 %v1168
        %v1170 = vpop.xlane.xlu0 %1169
        %v1171 = vsub.f32 %v1157, %v1167
        %v1172 = vsub.f32 %v1162, %v1170
        %v1173 = vmul.f32 %v1171, 1.442695
        %v1174 = vpow.pop %v1173
        %v1175 = vmul.f32 %v1172, 1.442695
        %v1176 = vpow.pop %v1175
        %v1177 = vsel %vm962, %v1174, 0.0
        %1178 = vadd.xlane.f32.xlu0 %v1177
        %v1179 = vpop.xlane.xlu0 %1178
        %v1180 = vsel %vm962, %v1176, 0.0
        %1181 = vadd.xlane.f32.xlu0 %v1180
        %v1182 = vpop.xlane.xlu0 %1181
        %v1183 = vrcp.pop %v1179
        %v1184 = vrcp.pop %v1182
        %v1185 = vmul.f32 %v1174, %v1183
        %v1186 = vmul.f32 %v1176, %v1184
        %1189 = vrot.lane.b32.xlu0 %v1070, 96
        %v1190 = vpop.permute.xlu0 %1189
        %1191 = vrot.lane.b32.xlu0 %v1071, 96
        %v1192 = vpop.permute.xlu0 %1191
        %v1196 = vsel %vm962, %v1185, 0
        %v1199 = vsel %vm962, %v1186, 0
        %1201 = vmatprep.subr.mxu0 0.0
        %1202 = vmatpush1.msra.mxu0 %v1190
        %1203 = vmatprep.subr.mxu0 0.0
        %1204 = vmatpush1.msra.mxu0 %v1192
        %1205 = vmatprep.subr.mxu0 0.0
        %1206 = vmatpush1.msra.mxu0 0.0
        %1207 = vmatprep.subr.mxu0 0.0
        %1208 = vmatpush1.msra.mxu0 0.0
        %1209 = vmatprep.subr.mxu0 0.0
        %1210 = vmatpush1.msra.mxu0 0.0
        %1211 = vmatprep.subr.mxu0 0.0
        %1212 = vmatpush1.msra.mxu0 0.0
        %1213 = vmatprep.subr.mxu0 0.0
        %1214 = vmatpush1.msra.mxu0 0.0
        %1215 = vmatprep.subr.mxu0 0.0
        %1216 = vmatpush1.msra.mxu0 0.0
        %1217 = vmatprep.subr.mxu0 0.0
        %1218 = vmatpush1.msra.mxu0 0.0
        %1219 = vmatprep.subr.mxu0 0.0
        %1220 = vmatpush1.msra.mxu0 0.0
        %1221 = vmatprep.subr.mxu0 0.0
        %1222 = vmatpush1.msra.mxu0 0.0
        %1223 = vmatprep.subr.mxu0 0.0
        %1224 = vmatpush1.msra.mxu0 0.0
        %1225 = vmatprep.subr.mxu0 0.0
        %1226 = vmatpush1.msra.mxu0 0.0
        %1227 = vmatprep.subr.mxu0 0.0
        %1228 = vmatpush1.msra.mxu0 0.0
        %1229 = vmatprep.subr.mxu0 0.0
        %1230 = vmatpush1.msra.mxu0 0.0
        %1231 = vmatprep.subr.mxu0 0.0
        %1232 = vmatpush1.msra.mxu0 0.0
        %1233 = vmatprep.subr.mxu0 0.0
        %1234 = vmatpush1.msra.mxu0 0.0
        %1235 = vmatprep.subr.mxu0 0.0
        %1236 = vmatpush1.msra.mxu0 0.0
        %1237 = vmatprep.subr.mxu0 0.0
        %1238 = vmatpush1.msra.mxu0 0.0
        %1239 = vmatprep.subr.mxu0 0.0
        %1240 = vmatpush1.msra.mxu0 0.0
        %1241 = vmatprep.subr.mxu0 0.0
        %1242 = vmatpush1.msra.mxu0 0.0
        %1243 = vmatprep.subr.mxu0 0.0
        %1244 = vmatpush1.msra.mxu0 0.0
        %1245 = vmatprep.subr.mxu0 0.0
        %1246 = vmatpush1.msra.mxu0 0.0
        %1247 = vmatprep.subr.mxu0 0.0
        %1248 = vmatpush1.msra.mxu0 0.0
        %1249 = vmatprep.subr.mxu0 0.0
        %1250 = vmatpush1.msra.mxu0 0.0
        %1251 = vmatprep.subr.mxu0 0.0
        %1252 = vmatpush1.msra.mxu0 0.0
        %1253 = vmatprep.subr.mxu0 0.0
        %1254 = vmatpush1.msra.mxu0 0.0
        %1255 = vmatprep.subr.mxu0 0.0
        %1256 = vmatpush1.msra.mxu0 0.0
        %1257 = vmatprep.subr.mxu0 0.0
        %1258 = vmatpush1.msra.mxu0 0.0
        %1259 = vmatprep.subr.mxu0 0.0
        %1260 = vmatpush1.msra.mxu0 0.0
        %1261 = vmatprep.subr.mxu0 0.0
        %1262 = vmatpush1.msra.mxu0 0.0
        %1263 = vmatprep.subr.mxu0 0.0
        %1264 = vmatpush1.msra.mxu0 0.0
        %1265 = vmatprep.mubr.f32.mxu0 0.0
        %1266 = vmatmul.mubr.f32.gmra.mrb[0].mxu0 %v1196
        %v1267 = vpop.f32.mrb[0].mxu0
        %v1268 = vadd.f32 0.0, %v1267
        %v1269 = vpop.f32.mrb[0].mxu0
        %1270 = vmatprep.mubr.f32.mxu0 0.0
        %1271 = vmatmul.mubr.f32.gmra.mrb[0].mxu0 %v1199
        %v1272 = vpop.f32.mrb[0].mxu0
        %v1273 = vadd.f32 0.0, %v1272
        %v1274 = vpop.f32.mrb[0].mxu0
        %1275 = vdwg.mxu0
        %1278 = vrot.lane.b32.xlu0 %v1268, 32
        %v1279 = vpop.permute.xlu0 %1278
        %1280 = vrot.lane.b32.xlu0 %v1273, 32
        %v1281 = vpop.permute.xlu0 %1280
        %vm1284 = vcmask 523520
        %1285 = vst.msk [vmem:[#allocation4] sm:$0xff] %vm1284, %v1279
        %1286 = vst.msk [vmem:[#allocation4 + $0x8] sm:$0xff] %vm1284, %v1281
        %v1287 = vld [vmem:[#allocation2] sm:$0xff]
        %v1288 = vld [vmem:[#allocation2 + $0x8] sm:$0xff]
        %v1289 = vld [vmem:[#allocation3] sm:$0xff]
        %v1290 = vld [vmem:[#allocation3 + $0x8] sm:$0xff]
        %1291 = vrot.lane.b32.xlu0 %v868, 64
        %v1292 = vpop.permute.xlu0 %1291
        %1293 = vrot.lane.b32.xlu0 %v869, 64
        %v1294 = vpop.permute.xlu0 %1293
        %1297 = vrot.lane.b32.xlu0 %v1287, 64
        %v1298 = vpop.permute.xlu0 %1297
        %1299 = vrot.lane.b32.xlu0 %v1288, 64
        %v1300 = vpop.permute.xlu0 %1299
        %v1301 = vsel %vm874, %v1292, 0
        %v1303 = vsel %vm874, %v1294, 0
        %v1305 = vsel %vm874, %v1298, 0
        %v1307 = vsel %vm874, %v1300, 0
        %1309 = vmatprep.subr.mxu0 0.0
        %1310 = vmatpush1.xpose.msra.mxu0 %v1305
        %1311 = vmatprep.subr.mxu0 0.0
        %1312 = vmatpush1.xpose.msra.mxu0 %v1307
        %1313 = vmatprep.subr.mxu0 0.0
        %1314 = vmatpush1.xpose.msra.mxu0 0.0
        %1315 = vmatprep.subr.mxu0 0.0
        %1316 = vmatpush1.xpose.msra.mxu0 0.0
        %1317 = vmatprep.subr.mxu0 0.0
        %1318 = vmatpush1.xpose.msra.mxu0 0.0
        %1319 = vmatprep.subr.mxu0 0.0
        %1320 = vmatpush1.xpose.msra.mxu0 0.0
        %1321 = vmatprep.subr.mxu0 0.0
        %1322 = vmatpush1.xpose.msra.mxu0 0.0
        %1323 = vmatprep.subr.mxu0 0.0
        %1324 = vmatpush1.xpose.msra.mxu0 0.0
        %1325 = vmatprep.subr.mxu0 0.0
        %1326 = vmatpush1.xpose.msra.mxu0 0.0
        %1327 = vmatprep.subr.mxu0 0.0
        %1328 = vmatpush1.xpose.msra.mxu0 0.0
        %1329 = vmatprep.subr.mxu0 0.0
        %1330 = vmatpush1.xpose.msra.mxu0 0.0
        %1331 = vmatprep.subr.mxu0 0.0
        %1332 = vmatpush1.xpose.msra.mxu0 0.0
        %1333 = vmatprep.subr.mxu0 0.0
        %1334 = vmatpush1.xpose.msra.mxu0 0.0
        %1335 = vmatprep.subr.mxu0 0.0
        %1336 = vmatpush1.xpose.msra.mxu0 0.0
        %1337 = vmatprep.subr.mxu0 0.0
        %1338 = vmatpush1.xpose.msra.mxu0 0.0
        %1339 = vmatprep.subr.mxu0 0.0
        %1340 = vmatpush1.xpose.msra.mxu0 0.0
        %1341 = vmatprep.subr.mxu0 0.0
        %1342 = vmatpush1.xpose.msra.mxu0 0.0
        %1343 = vmatprep.subr.mxu0 0.0
        %1344 = vmatpush1.xpose.msra.mxu0 0.0
        %1345 = vmatprep.subr.mxu0 0.0
        %1346 = vmatpush1.xpose.msra.mxu0 0.0
        %1347 = vmatprep.subr.mxu0 0.0
        %1348 = vmatpush1.xpose.msra.mxu0 0.0
        %1349 = vmatprep.subr.mxu0 0.0
        %1350 = vmatpush1.xpose.msra.mxu0 0.0
        %1351 = vmatprep.subr.mxu0 0.0
        %1352 = vmatpush1.xpose.msra.mxu0 0.0
        %1353 = vmatprep.subr.mxu0 0.0
        %1354 = vmatpush1.xpose.msra.mxu0 0.0
        %1355 = vmatprep.subr.mxu0 0.0
        %1356 = vmatpush1.xpose.msra.mxu0 0.0
        %1357 = vmatprep.subr.mxu0 0.0
        %1358 = vmatpush1.xpose.msra.mxu0 0.0
        %1359 = vmatprep.subr.mxu0 0.0
        %1360 = vmatpush1.xpose.msra.mxu0 0.0
        %1361 = vmatprep.subr.mxu0 0.0
        %1362 = vmatpush1.xpose.msra.mxu0 0.0
        %1363 = vmatprep.subr.mxu0 0.0
        %1364 = vmatpush1.xpose.msra.mxu0 0.0
        %1365 = vmatprep.subr.mxu0 0.0
        %1366 = vmatpush1.xpose.msra.mxu0 0.0
        %1367 = vmatprep.subr.mxu0 0.0
        %1368 = vmatpush1.xpose.msra.mxu0 0.0
        %1369 = vmatprep.subr.mxu0 0.0
        %1370 = vmatpush1.xpose.msra.mxu0 0.0
        %1371 = vmatprep.subr.mxu0 0.0
        %1372 = vmatpush1.xpose.msra.mxu0 0.0
        %1373 = vmatprep.mubr.f32.mxu0 0.0
        %1374 = vmatmul.mubr.f32.gmra.mrb[0].mxu0 %v1301
        %v1375 = vpop.f32.mrb[0].mxu0
        %v1376 = vadd.f32 0.0, %v1375
        %v1377 = vpop.f32.mrb[0].mxu0
        %1378 = vmatprep.mubr.f32.mxu0 0.0
        %1379 = vmatmul.mubr.f32.gmra.mrb[0].mxu0 %v1303
        %v1380 = vpop.f32.mrb[0].mxu0
        %v1381 = vadd.f32 0.0, %v1380
        %v1382 = vpop.f32.mrb[0].mxu0
        %1383 = vdwg.mxu0
        %v1384 = vsel %vm962, %v1376, -inf
        %1385 = vmax.xlane.f32.xlu0 %v1384
        %v1386 = vpop.xlane.xlu0 %1385
        %v1387 = vsel %vm962, %v1381, -inf
        %1388 = vmax.xlane.f32.xlu0 %v1387
        %v1389 = vpop.xlane.xlu0 %1388
        %v1390 = vsub.f32 %v1376, %v1386
        %v1391 = vsub.f32 %v1381, %v1389
        %v1392 = vmul.f32 %v1390, 1.442695
        %v1393 = vpow.pop %v1392
        %v1394 = vmul.f32 %v1391, 1.442695
        %v1395 = vpow.pop %v1394
        %v1396 = vsel %vm962, %v1393, 0.0
        %1397 = vadd.xlane.f32.xlu0 %v1396
        %v1398 = vpop.xlane.xlu0 %1397
        %v1399 = vsel %vm962, %v1395, 0.0
        %1400 = vadd.xlane.f32.xlu0 %v1399
        %v1401 = vpop.xlane.xlu0 %1400
        %v1402 = vrcp.pop %v1398
        %v1403 = vrcp.pop %v1401
        %v1404 = vmul.f32 %v1393, %v1402
        %v1405 = vmul.f32 %v1395, %v1403
        %1408 = vrot.lane.b32.xlu0 %v1289, 64
        %v1409 = vpop.permute.xlu0 %1408
        %1410 = vrot.lane.b32.xlu0 %v1290, 64
        %v1411 = vpop.permute.xlu0 %1410
        %v1415 = vsel %vm962, %v1404, 0
        %v1418 = vsel %vm962, %v1405, 0
        %1420 = vmatprep.subr.mxu0 0.0
        %1421 = vmatpush1.msra.mxu0 %v1409
        %1422 = vmatprep.subr.mxu0 0.0
        %1423 = vmatpush1.msra.mxu0 %v1411
        %1424 = vmatprep.subr.mxu0 0.0
        %1425 = vmatpush1.msra.mxu0 0.0
        %1426 = vmatprep.subr.mxu0 0.0
        %1427 = vmatpush1.msra.mxu0 0.0
        %1428 = vmatprep.subr.mxu0 0.0
        %1429 = vmatpush1.msra.mxu0 0.0
        %1430 = vmatprep.subr.mxu0 0.0
        %1431 = vmatpush1.msra.mxu0 0.0
        %1432 = vmatprep.subr.mxu0 0.0
        %1433 = vmatpush1.msra.mxu0 0.0
        %1434 = vmatprep.subr.mxu0 0.0
        %1435 = vmatpush1.msra.mxu0 0.0
        %1436 = vmatprep.subr.mxu0 0.0
        %1437 = vmatpush1.msra.mxu0 0.0
        %1438 = vmatprep.subr.mxu0 0.0
        %1439 = vmatpush1.msra.mxu0 0.0
        %1440 = vmatprep.subr.mxu0 0.0
        %1441 = vmatpush1.msra.mxu0 0.0
        %1442 = vmatprep.subr.mxu0 0.0
        %1443 = vmatpush1.msra.mxu0 0.0
        %1444 = vmatprep.subr.mxu0 0.0
        %1445 = vmatpush1.msra.mxu0 0.0
        %1446 = vmatprep.subr.mxu0 0.0
        %1447 = vmatpush1.msra.mxu0 0.0
        %1448 = vmatprep.subr.mxu0 0.0
        %1449 = vmatpush1.msra.mxu0 0.0
        %1450 = vmatprep.subr.mxu0 0.0
        %1451 = vmatpush1.msra.mxu0 0.0
        %1452 = vmatprep.subr.mxu0 0.0
        %1453 = vmatpush1.msra.mxu0 0.0
        %1454 = vmatprep.subr.mxu0 0.0
        %1455 = vmatpush1.msra.mxu0 0.0
        %1456 = vmatprep.subr.mxu0 0.0
        %1457 = vmatpush1.msra.mxu0 0.0
        %1458 = vmatprep.subr.mxu0 0.0
        %1459 = vmatpush1.msra.mxu0 0.0
        %1460 = vmatprep.subr.mxu0 0.0
        %1461 = vmatpush1.msra.mxu0 0.0
        %1462 = vmatprep.subr.mxu0 0.0
        %1463 = vmatpush1.msra.mxu0 0.0
        %1464 = vmatprep.subr.mxu0 0.0
        %1465 = vmatpush1.msra.mxu0 0.0
        %1466 = vmatprep.subr.mxu0 0.0
        %1467 = vmatpush1.msra.mxu0 0.0
        %1468 = vmatprep.subr.mxu0 0.0
        %1469 = vmatpush1.msra.mxu0 0.0
        %1470 = vmatprep.subr.mxu0 0.0
        %1471 = vmatpush1.msra.mxu0 0.0
        %1472 = vmatprep.subr.mxu0 0.0
        %1473 = vmatpush1.msra.mxu0 0.0
        %1474 = vmatprep.subr.mxu0 0.0
        %1475 = vmatpush1.msra.mxu0 0.0
        %1476 = vmatprep.subr.mxu0 0.0
        %1477 = vmatpush1.msra.mxu0 0.0
        %1478 = vmatprep.subr.mxu0 0.0
        %1479 = vmatpush1.msra.mxu0 0.0
        %1480 = vmatprep.subr.mxu0 0.0
        %1481 = vmatpush1.msra.mxu0 0.0
        %1482 = vmatprep.subr.mxu0 0.0
        %1483 = vmatpush1.msra.mxu0 0.0
        %1484 = vmatprep.mubr.f32.mxu0 0.0
        %1485 = vmatmul.mubr.f32.gmra.mrb[0].mxu0 %v1415
        %v1486 = vpop.f32.mrb[0].mxu0
        %v1487 = vadd.f32 0.0, %v1486
        %v1488 = vpop.f32.mrb[0].mxu0
        %1489 = vmatprep.mubr.f32.mxu0 0.0
        %1490 = vmatmul.mubr.f32.gmra.mrb[0].mxu0 %v1418
        %v1491 = vpop.f32.mrb[0].mxu0
        %v1492 = vadd.f32 0.0, %v1491
        %v1493 = vpop.f32.mrb[0].mxu0
        %1494 = vdwg.mxu0
        %1497 = vrot.lane.b32.xlu0 %v1487, 64
        %v1498 = vpop.permute.xlu0 %1497
        %1499 = vrot.lane.b32.xlu0 %v1492, 64
        %v1500 = vpop.permute.xlu0 %1499
        %vm1503 = vcmask 785920
        %1504 = vst.msk [vmem:[#allocation4] sm:$0xff] %vm1503, %v1498
        %1505 = vst.msk [vmem:[#allocation4 + $0x8] sm:$0xff] %vm1503, %v1500
        %v1506 = vld [vmem:[#allocation2] sm:$0xff]
        %v1507 = vld [vmem:[#allocation2 + $0x8] sm:$0xff]
        %v1508 = vld [vmem:[#allocation3] sm:$0xff]
        %v1509 = vld [vmem:[#allocation3 + $0x8] sm:$0xff]
        %1510 = vrot.lane.b32.xlu0 %v868, 32
        %v1511 = vpop.permute.xlu0 %1510
        %1512 = vrot.lane.b32.xlu0 %v869, 32
        %v1513 = vpop.permute.xlu0 %1512
        %1516 = vrot.lane.b32.xlu0 %v1506, 32
        %v1517 = vpop.permute.xlu0 %1516
        %1518 = vrot.lane.b32.xlu0 %v1507, 32
        %v1519 = vpop.permute.xlu0 %1518
        %v1520 = vsel %vm874, %v1511, 0
        %v1522 = vsel %vm874, %v1513, 0
        %v1524 = vsel %vm874, %v1517, 0
        %v1526 = vsel %vm874, %v1519, 0
        %1528 = vmatprep.subr.mxu0 0.0
        %1529 = vmatpush1.xpose.msra.mxu0 %v1524
        %1530 = vmatprep.subr.mxu0 0.0
        %1531 = vmatpush1.xpose.msra.mxu0 %v1526
        %1532 = vmatprep.subr.mxu0 0.0
        %1533 = vmatpush1.xpose.msra.mxu0 0.0
        %1534 = vmatprep.subr.mxu0 0.0
        %1535 = vmatpush1.xpose.msra.mxu0 0.0
        %1536 = vmatprep.subr.mxu0 0.0
        %1537 = vmatpush1.xpose.msra.mxu0 0.0
        %1538 = vmatprep.subr.mxu0 0.0
        %1539 = vmatpush1.xpose.msra.mxu0 0.0
        %1540 = vmatprep.subr.mxu0 0.0
        %1541 = vmatpush1.xpose.msra.mxu0 0.0
        %1542 = vmatprep.subr.mxu0 0.0
        %1543 = vmatpush1.xpose.msra.mxu0 0.0
        %1544 = vmatprep.subr.mxu0 0.0
        %1545 = vmatpush1.xpose.msra.mxu0 0.0
        %1546 = vmatprep.subr.mxu0 0.0
        %1547 = vmatpush1.xpose.msra.mxu0 0.0
        %1548 = vmatprep.subr.mxu0 0.0
        %1549 = vmatpush1.xpose.msra.mxu0 0.0
        %1550 = vmatprep.subr.mxu0 0.0
        %1551 = vmatpush1.xpose.msra.mxu0 0.0
        %1552 = vmatprep.subr.mxu0 0.0
        %1553 = vmatpush1.xpose.msra.mxu0 0.0
        %1554 = vmatprep.subr.mxu0 0.0
        %1555 = vmatpush1.xpose.msra.mxu0 0.0
        %1556 = vmatprep.subr.mxu0 0.0
        %1557 = vmatpush1.xpose.msra.mxu0 0.0
        %1558 = vmatprep.subr.mxu0 0.0
        %1559 = vmatpush1.xpose.msra.mxu0 0.0
        %1560 = vmatprep.subr.mxu0 0.0
        %1561 = vmatpush1.xpose.msra.mxu0 0.0
        %1562 = vmatprep.subr.mxu0 0.0
        %1563 = vmatpush1.xpose.msra.mxu0 0.0
        %1564 = vmatprep.subr.mxu0 0.0
        %1565 = vmatpush1.xpose.msra.mxu0 0.0
        %1566 = vmatprep.subr.mxu0 0.0
        %1567 = vmatpush1.xpose.msra.mxu0 0.0
        %1568 = vmatprep.subr.mxu0 0.0
        %1569 = vmatpush1.xpose.msra.mxu0 0.0
        %1570 = vmatprep.subr.mxu0 0.0
        %1571 = vmatpush1.xpose.msra.mxu0 0.0
        %1572 = vmatprep.subr.mxu0 0.0
        %1573 = vmatpush1.xpose.msra.mxu0 0.0
        %1574 = vmatprep.subr.mxu0 0.0
        %1575 = vmatpush1.xpose.msra.mxu0 0.0
        %1576 = vmatprep.subr.mxu0 0.0
        %1577 = vmatpush1.xpose.msra.mxu0 0.0
        %1578 = vmatprep.subr.mxu0 0.0
        %1579 = vmatpush1.xpose.msra.mxu0 0.0
        %1580 = vmatprep.subr.mxu0 0.0
        %1581 = vmatpush1.xpose.msra.mxu0 0.0
        %1582 = vmatprep.subr.mxu0 0.0
        %1583 = vmatpush1.xpose.msra.mxu0 0.0
        %1584 = vmatprep.subr.mxu0 0.0
        %1585 = vmatpush1.xpose.msra.mxu0 0.0
        %1586 = vmatprep.subr.mxu0 0.0
        %1587 = vmatpush1.xpose.msra.mxu0 0.0
        %1588 = vmatprep.subr.mxu0 0.0
        %1589 = vmatpush1.xpose.msra.mxu0 0.0
        %1590 = vmatprep.subr.mxu0 0.0
        %1591 = vmatpush1.xpose.msra.mxu0 0.0
        %1592 = vmatprep.mubr.f32.mxu0 0.0
        %1593 = vmatmul.mubr.f32.gmra.mrb[0].mxu0 %v1520
        %v1594 = vpop.f32.mrb[0].mxu0
        %v1595 = vadd.f32 0.0, %v1594
        %v1596 = vpop.f32.mrb[0].mxu0
        %1597 = vmatprep.mubr.f32.mxu0 0.0
        %1598 = vmatmul.mubr.f32.gmra.mrb[0].mxu0 %v1522
        %v1599 = vpop.f32.mrb[0].mxu0
        %v1600 = vadd.f32 0.0, %v1599
        %v1601 = vpop.f32.mrb[0].mxu0
        %1602 = vdwg.mxu0
        %v1603 = vsel %vm962, %v1595, -inf
        %1604 = vmax.xlane.f32.xlu0 %v1603
        %v1605 = vpop.xlane.xlu0 %1604
        %v1606 = vsel %vm962, %v1600, -inf
        %1607 = vmax.xlane.f32.xlu0 %v1606
        %v1608 = vpop.xlane.xlu0 %1607
        %v1609 = vsub.f32 %v1595, %v1605
        %v1610 = vsub.f32 %v1600, %v1608
        %v1611 = vmul.f32 %v1609, 1.442695
        %v1612 = vpow.pop %v1611
        %v1613 = vmul.f32 %v1610, 1.442695
        %v1614 = vpow.pop %v1613
        %v1615 = vsel %vm962, %v1612, 0.0
        %1616 = vadd.xlane.f32.xlu0 %v1615
        %v1617 = vpop.xlane.xlu0 %1616
        %v1618 = vsel %vm962, %v1614, 0.0
        %1619 = vadd.xlane.f32.xlu0 %v1618
        %v1620 = vpop.xlane.xlu0 %1619
        %v1621 = vrcp.pop %v1617
        %v1622 = vrcp.pop %v1620
        %v1623 = vmul.f32 %v1612, %v1621
        %v1624 = vmul.f32 %v1614, %v1622
        %1627 = vrot.lane.b32.xlu0 %v1508, 32
        %v1628 = vpop.permute.xlu0 %1627
        %1629 = vrot.lane.b32.xlu0 %v1509, 32
        %v1630 = vpop.permute.xlu0 %1629
        %v1634 = vsel %vm962, %v1623, 0
        %v1637 = vsel %vm962, %v1624, 0
        %1639 = vmatprep.subr.mxu0 0.0
        %1640 = vmatpush1.msra.mxu0 %v1628
        %1641 = vmatprep.subr.mxu0 0.0
        %1642 = vmatpush1.msra.mxu0 %v1630
        %1643 = vmatprep.subr.mxu0 0.0
        %1644 = vmatpush1.msra.mxu0 0.0
        %1645 = vmatprep.subr.mxu0 0.0
        %1646 = vmatpush1.msra.mxu0 0.0
        %1647 = vmatprep.subr.mxu0 0.0
        %1648 = vmatpush1.msra.mxu0 0.0
        %1649 = vmatprep.subr.mxu0 0.0
        %1650 = vmatpush1.msra.mxu0 0.0
        %1651 = vmatprep.subr.mxu0 0.0
        %1652 = vmatpush1.msra.mxu0 0.0
        %1653 = vmatprep.subr.mxu0 0.0
        %1654 = vmatpush1.msra.mxu0 0.0
        %1655 = vmatprep.subr.mxu0 0.0
        %1656 = vmatpush1.msra.mxu0 0.0
        %1657 = vmatprep.subr.mxu0 0.0
        %1658 = vmatpush1.msra.mxu0 0.0
        %1659 = vmatprep.subr.mxu0 0.0
        %1660 = vmatpush1.msra.mxu0 0.0
        %1661 = vmatprep.subr.mxu0 0.0
        %1662 = vmatpush1.msra.mxu0 0.0
        %1663 = vmatprep.subr.mxu0 0.0
        %1664 = vmatpush1.msra.mxu0 0.0
        %1665 = vmatprep.subr.mxu0 0.0
        %1666 = vmatpush1.msra.mxu0 0.0
        %1667 = vmatprep.subr.mxu0 0.0
        %1668 = vmatpush1.msra.mxu0 0.0
        %1669 = vmatprep.subr.mxu0 0.0
        %1670 = vmatpush1.msra.mxu0 0.0
        %1671 = vmatprep.subr.mxu0 0.0
        %1672 = vmatpush1.msra.mxu0 0.0
        %1673 = vmatprep.subr.mxu0 0.0
        %1674 = vmatpush1.msra.mxu0 0.0
        %1675 = vmatprep.subr.mxu0 0.0
        %1676 = vmatpush1.msra.mxu0 0.0
        %1677 = vmatprep.subr.mxu0 0.0
        %1678 = vmatpush1.msra.mxu0 0.0
        %1679 = vmatprep.subr.mxu0 0.0
        %1680 = vmatpush1.msra.mxu0 0.0
        %1681 = vmatprep.subr.mxu0 0.0
        %1682 = vmatpush1.msra.mxu0 0.0
        %1683 = vmatprep.subr.mxu0 0.0
        %1684 = vmatpush1.msra.mxu0 0.0
        %1685 = vmatprep.subr.mxu0 0.0
        %1686 = vmatpush1.msra.mxu0 0.0
        %1687 = vmatprep.subr.mxu0 0.0
        %1688 = vmatpush1.msra.mxu0 0.0
        %1689 = vmatprep.subr.mxu0 0.0
        %1690 = vmatpush1.msra.mxu0 0.0
        %1691 = vmatprep.subr.mxu0 0.0
        %1692 = vmatpush1.msra.mxu0 0.0
        %1693 = vmatprep.subr.mxu0 0.0
        %1694 = vmatpush1.msra.mxu0 0.0
        %1695 = vmatprep.subr.mxu0 0.0
        %1696 = vmatpush1.msra.mxu0 0.0
        %1697 = vmatprep.subr.mxu0 0.0
        %1698 = vmatpush1.msra.mxu0 0.0
        %1699 = vmatprep.subr.mxu0 0.0
        %1700 = vmatpush1.msra.mxu0 0.0
        %1701 = vmatprep.subr.mxu0 0.0
        %1702 = vmatpush1.msra.mxu0 0.0
        %1703 = vmatprep.mubr.f32.mxu0 0.0
        %1704 = vmatmul.mubr.f32.gmra.mrb[0].mxu0 %v1634
        %v1705 = vpop.f32.mrb[0].mxu0
        %v1706 = vadd.f32 0.0, %v1705
        %v1707 = vpop.f32.mrb[0].mxu0
        %1708 = vmatprep.mubr.f32.mxu0 0.0
        %1709 = vmatmul.mubr.f32.gmra.mrb[0].mxu0 %v1637
        %v1710 = vpop.f32.mrb[0].mxu0
        %v1711 = vadd.f32 0.0, %v1710
        %v1712 = vpop.f32.mrb[0].mxu0
        %1713 = vdwg.mxu0
        %1716 = vrot.lane.b32.xlu0 %v1706, 96
        %v1717 = vpop.permute.xlu0 %1716
        %1718 = vrot.lane.b32.xlu0 %v1711, 96
        %v1719 = vpop.permute.xlu0 %1718
        %vm1722 = vcmask 1048320
        %1723 = vst.msk [vmem:[#allocation4] sm:$0xff] %vm1722, %v1717
        %1724 = vst.msk [vmem:[#allocation4 + $0x8] sm:$0xff] %vm1722, %v1719
        %v1725 = vld [vmem:[#allocation4] sm:$0xff]
        %v1726 = vld [vmem:[#allocation4 + $0x8] sm:$0xff]
        %v1727 = vld [vmem:[#allocation16] sm:$0xff]
        %v1728 = vld [vmem:[#allocation16 + $0x8] sm:$0xff]
        %v1729 = vld [vmem:[#allocation16 + $0x10] sm:$0xff]
        %v1730 = vld [vmem:[#allocation16 + $0x18] sm:$0xff]
        %v1731 = vld [vmem:[#allocation16 + $0x20] sm:$0xff]
        %v1732 = vld [vmem:[#allocation16 + $0x28] sm:$0xff]
        %v1733 = vld [vmem:[#allocation16 + $0x30] sm:$0xff]
        %v1734 = vld [vmem:[#allocation16 + $0x38] sm:$0xff]
        %v1735 = vld [vmem:[#allocation16 + $0x40] sm:$0xff]
        %v1736 = vld [vmem:[#allocation16 + $0x48] sm:$0xff]
        %v1737 = vld [vmem:[#allocation16 + $0x50] sm:$0xff]
        %v1738 = vld [vmem:[#allocation16 + $0x58] sm:$0xff]
        %v1739 = vld [vmem:[#allocation16 + $0x60] sm:$0xff]
        %v1740 = vld [vmem:[#allocation16 + $0x68] sm:$0xff]
        %v1741 = vld [vmem:[#allocation16 + $0x70] sm:$0xff]
        %v1742 = vld [vmem:[#allocation16 + $0x78] sm:$0xff]
        %v1743 = vld [vmem:[%s10] sm:$0x1]
        %v1745 = vlaneseq
        %v1746 = vshrl.u32 %v1745, 7
        %v1747 = vsub.s32 0, %v1746
        %v1748 = vrot.slane %v1743, %v1747
        %1750 = vmatprep.subr.mxu0 0.0
        %1751 = vmatpush1.msra.mxu0 %v1727
        %1752 = vmatprep.subr.mxu0 0.0
        %1753 = vmatpush1.msra.mxu0 %v1728
        %1754 = vmatprep.subr.mxu0 0.0
        %1755 = vmatpush1.msra.mxu0 %v1729
        %1756 = vmatprep.subr.mxu0 0.0
        %1757 = vmatpush1.msra.mxu0 %v1730
        %1758 = vmatprep.subr.mxu0 0.0
        %1759 = vmatpush1.msra.mxu0 %v1731
        %1760 = vmatprep.subr.mxu0 0.0
        %1761 = vmatpush1.msra.mxu0 %v1732
        %1762 = vmatprep.subr.mxu0 0.0
        %1763 = vmatpush1.msra.mxu0 %v1733
        %1764 = vmatprep.subr.mxu0 0.0
        %1765 = vmatpush1.msra.mxu0 %v1734
        %1766 = vmatprep.subr.mxu0 0.0
        %1767 = vmatpush1.msra.mxu0 %v1735
        %1768 = vmatprep.subr.mxu0 0.0
        %1769 = vmatpush1.msra.mxu0 %v1736
        %1770 = vmatprep.subr.mxu0 0.0
        %1771 = vmatpush1.msra.mxu0 %v1737
        %1772 = vmatprep.subr.mxu0 0.0
        %1773 = vmatpush1.msra.mxu0 %v1738
        %1774 = vmatprep.subr.mxu0 0.0
        %1775 = vmatpush1.msra.mxu0 %v1739
        %1776 = vmatprep.subr.mxu0 0.0
        %1777 = vmatpush1.msra.mxu0 %v1740
        %1778 = vmatprep.subr.mxu0 0.0
        %1779 = vmatpush1.msra.mxu0 %v1741
        %1780 = vmatprep.subr.mxu0 0.0
        %1781 = vmatpush1.msra.mxu0 %v1742
        %1782 = vmatprep.subr.mxu0 0.0
        %1783 = vmatpush1.msra.mxu0 0.0
        %1784 = vmatprep.subr.mxu0 0.0
        %1785 = vmatpush1.msra.mxu0 0.0
        %1786 = vmatprep.subr.mxu0 0.0
        %1787 = vmatpush1.msra.mxu0 0.0
        %1788 = vmatprep.subr.mxu0 0.0
        %1789 = vmatpush1.msra.mxu0 0.0
        %1790 = vmatprep.subr.mxu0 0.0
        %1791 = vmatpush1.msra.mxu0 0.0
        %1792 = vmatprep.subr.mxu0 0.0
        %1793 = vmatpush1.msra.mxu0 0.0
        %1794 = vmatprep.subr.mxu0 0.0
        %1795 = vmatpush1.msra.mxu0 0.0
        %1796 = vmatprep.subr.mxu0 0.0
        %1797 = vmatpush1.msra.mxu0 0.0
        %1798 = vmatprep.subr.mxu0 0.0
        %1799 = vmatpush1.msra.mxu0 0.0
        %1800 = vmatprep.subr.mxu0 0.0
        %1801 = vmatpush1.msra.mxu0 0.0
        %1802 = vmatprep.subr.mxu0 0.0
        %1803 = vmatpush1.msra.mxu0 0.0
        %1804 = vmatprep.subr.mxu0 0.0
        %1805 = vmatpush1.msra.mxu0 0.0
        %1806 = vmatprep.subr.mxu0 0.0
        %1807 = vmatpush1.msra.mxu0 0.0
        %1808 = vmatprep.subr.mxu0 0.0
        %1809 = vmatpush1.msra.mxu0 0.0
        %1810 = vmatprep.subr.mxu0 0.0
        %1811 = vmatpush1.msra.mxu0 0.0
        %1812 = vmatprep.subr.mxu0 0.0
        %1813 = vmatpush1.msra.mxu0 0.0
        %1814 = vmatprep.mubr.f32.mxu0 0.0
        %1815 = vmatmul.mubr.f32.gmra.mrb[0].mxu0 %v1725
        %v1816 = vpop.f32.mrb[0].mxu0
        %v1817 = vadd.f32 %v1748, %v1816
        %v1818 = vpop.f32.mrb[0].mxu0
        %1819 = vmatprep.mubr.f32.mxu0 0.0
        %1820 = vmatmul.mubr.f32.gmra.mrb[0].mxu0 %v1726
        %v1821 = vpop.f32.mrb[0].mxu0
        %v1822 = vadd.f32 %v1748, %v1821
        %v1823 = vpop.f32.mrb[0].mxu0
        %1824 = vdwg.mxu0
        %1825 = vst [vmem:[%s557] sm:$0xff] %v1817
        %1826 = vst [vmem:[%s557 + $0x8] sm:$0xff] %v1822
        %s1827 = sand.u32 %s303, 1
        %s1828 = scalar_lea.sflag [#allocation7], %s1827
        %s1829 = sand.u32 %s303, 1
        %s1830 = smul.addr %s1829, 16
        %s1831 = scalar_lea.vmem [#allocation17], %s1830
        // Predicated region
        $region97: #{tpu_custom_call.1} parent=63 // pred_check
          %p1832 = pneg %p313
        $region98: #{tpu_custom_call.1} parent=63 // pred_check_branch
          %1834 = sbr.rel (%p1832) target = $region100
        $region99: #{tpu_custom_call.1} parent=63 // pred_region
          %s1835 = smul.u32 2, %s38
          %s1837 = ssub.s32 256, 256
          %1838 = vsyncadd %s1828, %s1837
          %s1839 = smul.addr %s37, 2
          %s1840 = sadd.s32 %s1835, %s1839
          %s1841 = smul.addr %s1840, 128
          %s1842 = scalar_lea.hbm %s11, %s1841
          %s1843 = sshll.u32 %s1831, 4
          %s1844 = int_to_ptr.vmem [resolvable:$true] %s1843
          %1849 = dma.vmem_to_hbm [thread:$0]  %s1844, 256, %s1842, %s1828, 128, 128, 8
        $region100: #{tpu_custom_call.1} parent=63 // pred_fallthru
          _
      $region64: #{tpu_custom_call.1} parent=5 // pred_fallthru
        _
      %p1850 = scmp.le.s32.totalorder 2, %s28
      // Predicated region
      $region101: #{tpu_custom_call.1} parent=5 // pred_check
        %p1851 = pneg %p1850
      $region102: #{tpu_custom_call.1} parent=5 // pred_check_branch
        %1853 = sbr.rel (%p1851) target = $region104
      $region103: #{tpu_custom_call.1} parent=5 // pred_region
        %s1854 = ssub.s32 %s28, 2
        // Predicated region
        $region105: #{tpu_custom_call.1} parent=103 // pred_check
          %p1855 = pneg %p319
        $region106: #{tpu_custom_call.1} parent=103 // pred_check_branch
          %1857 = sbr.rel (%p1855) target = $region108
        $region107: #{tpu_custom_call.1} parent=103 // pred_region
          %s1858 = sand.u32 %s304, 1
          %s1859 = scalar_lea.sflag [#allocation7], %s1858
          %s1860 = sand.u32 %s304, 1
          %s1861 = smul.addr %s1860, 16
          %s1862 = scalar_lea.vmem [#allocation17], %s1861
          %1863 = dma.done %s1859, 256
        $region108: #{tpu_custom_call.1} parent=103 // pred_fallthru
          _
      $region104: #{tpu_custom_call.1} parent=5 // pred_fallthru
        _
    $region6: #{tpu_custom_call.1} parent=1 // loop_footer
      %s32 = sadd.s32 1, %s28
    $region7: #{tpu_custom_call.1} parent=1 // loop_footer_branch
      %27 = sbr.rel target = $region3
    $region8: #{tpu_custom_call.1} parent=1 // loop_exit
      _
    %1864 = vsyncpa [#allocation6], 1
    %s1865 = scalar_lea.sflag [#allocation6], 1
    %1866 = vsyncpa %s1865, 1
    %1867 = vsyncpa [#allocation9], 1
    %s1868 = scalar_lea.sflag [#allocation9], 1
    %1869 = vsyncpa %s1868, 1
    %1870 = vsyncpa [#allocation12], 1
    %1871 = vsyncpa [#allocation15], 1
    %1872 = vsyncpa [#allocation7], 1
    %s1873 = scalar_lea.sflag [#allocation7], 1
    %1874 = vsyncpa %s1873, 1

</llo_original>
